<compile_context>
chip_gen: v5e
topology: v5e:2x2
jax: 0.10.0
libtpu: 0.0.40
codegen_flags: <defaults>
</compile_context>

<pallas_src>
import jax
import jax.numpy as jnp
from jax.experimental import pallas as pl
from jax.experimental.pallas import tpu as pltpu


# --------------------------- parameter initialization ------------------------
def init_params(key, d_features, d_hidden, num_layers, num_heads,
                d_linear_layers, d_out):
    C = d_hidden // num_heads
    bn_eps = 1e-5
    params = {"gat": [], "linear": []}
    in_dim = d_features
    for _ in range(num_layers):
        key, k1, k2, k3 = jax.random.split(key, 4)
        wl = jax.random.normal(k1, (in_dim, d_hidden), jnp.float32) / jnp.sqrt(in_dim)
        wr = jax.random.normal(k2, (in_dim, d_hidden), jnp.float32) / jnp.sqrt(in_dim)
        att = jax.random.normal(k3, (num_heads, C), jnp.float32) / jnp.sqrt(C)
        # BatchNorm default init (gamma=1, beta=0) + running stats (0, 1), folded
        gamma = jnp.ones((d_hidden,), jnp.float32)
        beta = jnp.zeros((d_hidden,), jnp.float32)
        run_mean = jnp.zeros((d_hidden,), jnp.float32)
        run_var = jnp.ones((d_hidden,), jnp.float32)
        scale = gamma / jnp.sqrt(run_var + bn_eps)
        shift = beta - run_mean * scale
        params["gat"].append(dict(
            wl=wl, wr=wr, att=att,
            bl=jnp.zeros((d_hidden,), jnp.float32),
            br=jnp.zeros((d_hidden,), jnp.float32),
            bias=jnp.zeros((d_hidden,), jnp.float32),
            scale=scale, shift=shift))
        in_dim = d_hidden
    dims = [d_hidden] + list(d_linear_layers) + [d_out]
    for i in range(len(dims) - 1):
        key, kw = jax.random.split(key)
        w = jax.random.normal(kw, (dims[i], dims[i + 1]), jnp.float32) / jnp.sqrt(dims[i])
        b = jnp.zeros((dims[i + 1],), jnp.float32)
        params["linear"].append((w, b))
    return params


# ----------------------- host-side parameter packing -------------------------
def pack_params(params, d_features, n_nodes):
    """Pack all weights/vectors into two 128-lane-padded slabs + a layout plan."""
    gat, lins = params["gat"], params["linear"]
    num_layers = len(gat)
    H, C = gat[0]["att"].shape
    d_hidden = H * C
    N = int(n_nodes)
    CN = C * N

    lin_dims = [int(w.shape[0]) for w, _ in lins] + [int(w.shape[1]) for w, _ in lins]
    LW = max([128, CN, d_hidden, d_features] + lin_dims)
    LW = ((LW + 127) // 128) * 128          # lane-dense slab width

    wblocks, wrow = [], [0]                 # bf16 matrix slab (rows x LW)
    def add_w(mat):
        mat = jnp.asarray(mat, jnp.bfloat16)
        r, c = mat.shape
        rp = ((r + 15) // 16) * 16          # keep blocks sublane-tile aligned
        wblocks.append(jnp.pad(mat, ((0, rp - r), (0, LW - c))))
        off = wrow[0]
        wrow[0] += rp
        return off

    vblocks, vrow = [], [0]                 # f32 vector slab (rows x LW)
    def add_v(mat):
        mat = jnp.asarray(mat, jnp.float32)
        if mat.ndim == 1:
            mat = mat[None, :]
        r, c = mat.shape
        vblocks.append(jnp.pad(mat, ((0, 0), (0, LW - c))))
        off = vrow[0]
        vrow[0] += r
        return off

    plan = {"N": N, "H": H, "C": C, "CN": CN, "d_hidden": d_hidden,
            "gat": [], "linear": []}

    in_dim = d_features
    for l, p in enumerate(gat):
        meta = {"in_dim": in_dim}
        meta["wl"] = add_w(p["wl"])                         # (in_dim, d_hidden)
        meta["wrt"] = add_w(jnp.transpose(p["wr"]))         # (d_hidden, in_dim), pre-transposed
        meta["bl"] = add_v(p["bl"])                         # lin_l bias
        # att / lin_r-bias rows, pre-expanded to the packed lane layout c*N + i
        meta["att"] = add_v(jnp.repeat(p["att"], N, axis=1))                 # (H, CN)
        meta["brl"] = add_v(jnp.repeat(p["br"].reshape(H, C), N, axis=1))    # (H, CN)
        if l < num_layers - 1:
            # fold the GATv2 output bias into the eval-mode BatchNorm shift
            meta["scale"] = add_v(p["scale"])
            meta["shift"] = add_v(p["bias"] * p["scale"] + p["shift"])
        else:
            meta["bias"] = add_v(p["bias"])
        plan["gat"].append(meta)
        in_dim = d_hidden

    for w, b in lins:
        plan["linear"].append({"d_in": int(w.shape[0]), "d_out": int(w.shape[1]),
                               "w": add_w(w), "b": add_v(b)})

    # shared 0/1 channel-pack (E) and channel-reduce (R) matrices:
    #   E[c, c*N + i] = 1  : lane-replicates each xl channel N times
    #   R[c*N + i, i] = 1  : sums the C lane groups back to an (N, N) tile
    lanes = jnp.arange(CN)
    plan["E"] = add_w((lanes[None, :] // N == jnp.arange(C)[:, None]).astype(jnp.bfloat16))
    plan["R"] = add_w((lanes[:, None] % N == jnp.arange(N)[None, :]).astype(jnp.bfloat16))

    wslab = jnp.concatenate(wblocks, axis=0)
    vslab = jnp.concatenate(vblocks, axis=0)
    return wslab, vslab, plan


# ------------------------- fused encoder kernel ------------------------------
def make_encoder_kernel(plan, negative_slope=0.2):
    N, H, C, CN = plan["N"], plan["H"], plan["C"], plan["CN"]
    d_hidden = plan["d_hidden"]
    num_layers = len(plan["gat"])
    num_linear = len(plan["linear"])

    def kernel(x_ref, adj_ref, w_ref, v_ref, out_ref):
        # Dense edge mask with forced self-loops (GATv2 removes + re-adds them).
        adj = adj_ref[...].astype(jnp.int32)
        diag = (jax.lax.broadcasted_iota(jnp.int32, (N, N), 0) ==
                jax.lax.broadcasted_iota(jnp.int32, (N, N), 1))
        edge = jnp.logical_or(adj != 0, diag)
        neg_inf = jnp.float32(-1e30)

        # Shared 0/1 pack / reduce matrices (bf16, from the weight slab).
        E = w_ref[plan["E"]:plan["E"] + C, 0:CN]            # (C, CN)
        R = w_ref[plan["R"]:plan["R"] + CN, 0:N]            # (CN, N)

        h = x_ref[...]
        for l, meta in enumerate(plan["gat"]):
            in_dim = meta["in_dim"]
            hb = h.astype(jnp.bfloat16)
            wl = w_ref[meta["wl"]:meta["wl"] + in_dim, 0:d_hidden]
            wrt = w_ref[meta["wrt"]:meta["wrt"] + d_hidden, 0:in_dim]
            bl = v_ref[meta["bl"]:meta["bl"] + 1, 0:d_hidden]

            # lin_l projection (attention source term + messages): bf16 MXU, f32 acc
            xl = jnp.dot(hb, wl, preferred_element_type=jnp.float32) + bl
            # lin_r projection produced directly transposed: xr_t[k, i] = xr[i, k]
            # (wr is pre-transposed on the host; no identity-matmul transpose)
            xr_t = jax.lax.dot_general(wrt, hb, (((1,), (1,)), ((), ())),
                                       preferred_element_type=jnp.float32)

            head_outs = []
            for hh in range(H):
                xl_head = xl[:, hh * C:(hh + 1) * C]                      # (N, C)
                xl_head_b = xl_head.astype(jnp.bfloat16)
                # lane-packed logit tile, lane index = c*N + i (dst node i, channel c)
                l_tile = jnp.dot(xl_head_b, E,
                                 preferred_element_type=jnp.float32)      # (N, CN)
                r_row = jnp.concatenate(
                    [xr_t[hh * C + c:hh * C + c + 1, :] for c in range(C)],
                    axis=1)                                               # (1, CN)
                r_row = r_row + v_ref[meta["brl"] + hh:meta["brl"] + hh + 1, 0:CN]
                s = l_tile + r_row                                        # xl[j,c]+xr[i,c]
                leaky = jnp.maximum(s, negative_slope * s)
                att_row = v_ref[meta["att"] + hh:meta["att"] + hh + 1, 0:CN]
                term = leaky * att_row
                # channel reduction on the MXU: e[j, i] = sum_c term[j, c*N + i]
                e = jnp.dot(term.astype(jnp.bfloat16), R,
                            preferred_element_type=jnp.float32)           # (N, N)
                # masked softmax over source nodes j (grouped by target column i)
                e = jnp.where(edge, e, neg_inf)
                m = jnp.max(e, axis=0, keepdims=True)
                p = jnp.exp(e - m)               # masked entries underflow to 0
                denom = jnp.sum(p, axis=0, keepdims=True)
                alpha = p * pl.reciprocal(denom, approx=False)
                # out_h[i, :] = sum_j alpha[j, i] * xl[j, head]  (bf16 MXU, f32 acc)
                out_h = jax.lax.dot_general(
                    alpha.astype(jnp.bfloat16), xl_head_b,
                    (((0,), (0,)), ((), ())),
                    preferred_element_type=jnp.float32)                   # (N, C)
                head_outs.append(out_h)

            y = jnp.concatenate(head_outs, axis=1)                        # (N, d_hidden)
            if l < num_layers - 1:
                scale = v_ref[meta["scale"]:meta["scale"] + 1, 0:d_hidden]
                shift = v_ref[meta["shift"]:meta["shift"] + 1, 0:d_hidden]
                # folded eval-mode BatchNorm (conv bias pre-folded into shift) + ReLU
                y = jnp.maximum(y * scale + shift, 0.0)
            else:
                y = y + v_ref[meta["bias"]:meta["bias"] + 1, 0:d_hidden]
            h = y
            # TODO(synk): GAT inter-layer / attention dropout (p=0.1) is identity in eval mode.

        # MLP head fused into the same kernel
        for i, lm in enumerate(plan["linear"]):
            w = w_ref[lm["w"]:lm["w"] + lm["d_in"], 0:lm["d_out"]]
            b = v_ref[lm["b"]:lm["b"] + 1, 0:lm["d_out"]]
            h = jnp.dot(h.astype(jnp.bfloat16), w,
                        preferred_element_type=jnp.float32) + b
            if i < num_linear - 1:
                h = jnp.maximum(h, 0.0)
            # TODO(synk): Dropout(0.1) after each Linear is identity in eval mode.

        out_ref[...] = h          # single store

    return kernel


# --------------------------------- forward -----------------------------------
def gat_encoder_forward(params, x, adj, batch):
    del batch  # passed to the GAT in torch, but BatchNorm ignores it in eval
    N, F = x.shape
    wslab, vslab, plan = pack_params(params, F, N)
    d_out = plan["linear"][-1]["d_out"]
    kernel = make_encoder_kernel(plan)
    vmem = pl.BlockSpec(memory_space=pltpu.MemorySpace.VMEM)
    # TODO(synk): for batched graphs / large N, add a "parallel" graph-batch or
    # dst-tile grid axis (dimension_semantics) so v7x's second TensorCore and
    # the 256-wide MXUs get real work, and set vmem_limit_bytes for v7x tiling.
    return pl.pallas_call(
        kernel,
        out_shape=jax.ShapeDtypeStruct((N, d_out), jnp.float32),
        in_specs=[vmem, vmem, vmem, vmem],
        out_specs=vmem,
    )(x.astype(jnp.float32), (adj != 0).astype(jnp.int8), wslab, vslab)


if __name__ == "__main__":
    # small shapes consistent with the module (hidden divisible by 3 heads)
    N, F = 16, 16
    D_HIDDEN, NUM_LAYERS, NUM_HEADS = 24, 3, 3
    D_LINEAR, D_OUT = [32], 8

    key = jax.random.PRNGKey(0)
    kx, kadj, kp = jax.random.split(key, 3)
    x = jax.random.normal(kx, (N, F), jnp.float32)
    adj = (jax.random.uniform(kadj, (N, N)) < 0.3).astype(jnp.float32)
    batch = jnp.zeros((N,), jnp.int32)

    params = init_params(kp, F, D_HIDDEN, NUM_LAYERS, NUM_HEADS, D_LINEAR, D_OUT)
    out = gat_encoder_forward(params, x, adj, batch)
    out = jax.block_until_ready(out)
    assert out.shape == (N, D_OUT) and out.dtype == jnp.float32
    assert bool(jnp.all(jnp.isfinite(out)))
    print("KERNEL_OK")
</pallas_src>

<mosaic_0001>
module attributes {stable_mosaic.version = 11 : i64} {
  func.func @kernel(%arg0: memref<16x16xf32, #tpu.memory_space<vmem>>, %arg1: memref<16x16xi8, #tpu.memory_space<vmem>>, %arg2: memref<384x128xbf16, #tpu.memory_space<vmem>>, %arg3: memref<28x128xf32, #tpu.memory_space<vmem>>, %arg4: memref<16x8xf32, #tpu.memory_space<vmem>>) attributes {dimension_semantics = [], scalar_prefetch = 0 : i64, scratch_operands = 0 : i64, tpu.core_type = #tpu.core_type<tc>} {
    %c0 = arith.constant 0 : index
    %c0_0 = arith.constant 0 : index
    %0 = vector.load %arg1[%c0, %c0_0] : memref<16x16xi8, #tpu.memory_space<vmem>>, vector<16x16xi8>
    %1 = arith.extsi %0 : vector<16x16xi8> to vector<16x16xi32>
    %2 = tpu.iota {dimensions = array<i32: 0>} : vector<16x16xi32>
    %3 = tpu.iota {dimensions = array<i32: 1>} : vector<16x16xi32>
    %4 = arith.cmpi eq, %2, %3 : vector<16x16xi32>
    %c0_i32 = arith.constant 0 : i32
    %5 = vector.broadcast %c0_i32 : i32 to vector<16x16xi32>
    %6 = arith.cmpi ne, %1, %5 : vector<16x16xi32>
    %7 = arith.ori %6, %4 : vector<16x16xi1>
    %c240 = arith.constant 240 : index
    %c0_1 = arith.constant 0 : index
    %8 = vector.load %arg2[%c240, %c0_1] : memref<384x128xbf16, #tpu.memory_space<vmem>>, vector<8x128xbf16>
    %c256 = arith.constant 256 : index
    %c0_2 = arith.constant 0 : index
    %9 = vector.load %arg2[%c256, %c0_2] : memref<384x128xbf16, #tpu.memory_space<vmem>>, vector<128x16xbf16>
    %c0_3 = arith.constant 0 : index
    %c0_4 = arith.constant 0 : index
    %10 = vector.load %arg0[%c0_3, %c0_4] : memref<16x16xf32, #tpu.memory_space<vmem>>, vector<16x16xf32>
    %11 = arith.truncf %10 : vector<16x16xf32> to vector<16x16xbf16>
    %c0_5 = arith.constant 0 : index
    %c0_6 = arith.constant 0 : index
    %12 = vector.load %arg2[%c0_5, %c0_6] : memref<384x128xbf16, #tpu.memory_space<vmem>>, vector<16x24xbf16>
    %c16 = arith.constant 16 : index
    %c0_7 = arith.constant 0 : index
    %13 = vector.load %arg2[%c16, %c0_7] : memref<384x128xbf16, #tpu.memory_space<vmem>>, vector<24x16xbf16>
    %c0_8 = arith.constant 0 : index
    %c0_9 = arith.constant 0 : index
    %14 = vector.load %arg3[%c0_8, %c0_9] : memref<28x128xf32, #tpu.memory_space<vmem>>, vector<1x24xf32>
    %cst = arith.constant dense<0.000000e+00> : vector<16x24xf32>
    %15 = tpu.matmul %11, %12, %cst {dimension_numbers = #tpu.dot_dimension_numbers<[1], [0], [0], [1], [0, 0, 1, 1], [], []>} : vector<16x16xbf16>, vector<16x24xbf16>, vector<16x24xf32> -> vector<16x24xf32>
    %16 = vector.broadcast %14 : vector<1x24xf32> to vector<16x24xf32>
    %17 = arith.addf %15, %16 : vector<16x24xf32>
    %cst_10 = arith.constant dense<0.000000e+00> : vector<24x16xf32>
    %18 = tpu.matmul %13, %11, %cst_10 {dimension_numbers = #tpu.dot_dimension_numbers<[1], [1], [0], [0], [0, 0, 1, 0], [], []>} : vector<24x16xbf16>, vector<16x16xbf16>, vector<24x16xf32> -> vector<24x16xf32>
    %19 = vector.extract_strided_slice %17 {offsets = [0, 0], sizes = [16, 8], strides = [1, 1]} : vector<16x24xf32> to vector<16x8xf32>
    %20 = arith.truncf %19 : vector<16x8xf32> to vector<16x8xbf16>
    %cst_11 = arith.constant dense<0.000000e+00> : vector<16x128xf32>
    %21 = tpu.matmul %20, %8, %cst_11 {dimension_numbers = #tpu.dot_dimension_numbers<[1], [0], [0], [1], [0, 0, 1, 1], [], []>} : vector<16x8xbf16>, vector<8x128xbf16>, vector<16x128xf32> -> vector<16x128xf32>
    %22 = vector.extract_strided_slice %18 {offsets = [0, 0], sizes = [1, 16], strides = [1, 1]} : vector<24x16xf32> to vector<1x16xf32>
    %23 = vector.extract_strided_slice %18 {offsets = [1, 0], sizes = [1, 16], strides = [1, 1]} : vector<24x16xf32> to vector<1x16xf32>
    %24 = vector.extract_strided_slice %18 {offsets = [2, 0], sizes = [1, 16], strides = [1, 1]} : vector<24x16xf32> to vector<1x16xf32>
    %25 = vector.extract_strided_slice %18 {offsets = [3, 0], sizes = [1, 16], strides = [1, 1]} : vector<24x16xf32> to vector<1x16xf32>
    %26 = vector.extract_strided_slice %18 {offsets = [4, 0], sizes = [1, 16], strides = [1, 1]} : vector<24x16xf32> to vector<1x16xf32>
    %27 = vector.extract_strided_slice %18 {offsets = [5, 0], sizes = [1, 16], strides = [1, 1]} : vector<24x16xf32> to vector<1x16xf32>
    %28 = vector.extract_strided_slice %18 {offsets = [6, 0], sizes = [1, 16], strides = [1, 1]} : vector<24x16xf32> to vector<1x16xf32>
    %29 = vector.extract_strided_slice %18 {offsets = [7, 0], sizes = [1, 16], strides = [1, 1]} : vector<24x16xf32> to vector<1x16xf32>
    %30 = tpu.concatenate %22, %23, %24, %25, %26, %27, %28, %29 in 1 : vector<1x16xf32>, vector<1x16xf32>, vector<1x16xf32>, vector<1x16xf32>, vector<1x16xf32>, vector<1x16xf32>, vector<1x16xf32>, vector<1x16xf32> -> vector<1x128xf32>
    %c4 = arith.constant 4 : index
    %c0_12 = arith.constant 0 : index
    %31 = vector.load %arg3[%c4, %c0_12] : memref<28x128xf32, #tpu.memory_space<vmem>>, vector<1x128xf32>
    %32 = arith.addf %30, %31 : vector<1x128xf32>
    %33 = vector.broadcast %32 : vector<1x128xf32> to vector<16x128xf32>
    %34 = arith.addf %21, %33 : vector<16x128xf32>
    %cst_13 = arith.constant 2.000000e-01 : f32
    %35 = vector.broadcast %cst_13 : f32 to vector<16x128xf32>
    %36 = arith.mulf %35, %34 : vector<16x128xf32>
    %37 = arith.maximumf %34, %36 : vector<16x128xf32>
    %c1 = arith.constant 1 : index
    %c0_14 = arith.constant 0 : index
    %38 = vector.load %arg3[%c1, %c0_14] : memref<28x128xf32, #tpu.memory_space<vmem>>, vector<1x128xf32>
    %39 = vector.broadcast %38 : vector<1x128xf32> to vector<16x128xf32>
    %40 = arith.mulf %37, %39 : vector<16x128xf32>
    %41 = arith.truncf %40 : vector<16x128xf32> to vector<16x128xbf16>
    %cst_15 = arith.constant dense<0.000000e+00> : vector<16x16xf32>
    %42 = tpu.matmul %41, %9, %cst_15 {dimension_numbers = #tpu.dot_dimension_numbers<[1], [0], [0], [1], [0, 0, 1, 1], [], []>} : vector<16x128xbf16>, vector<128x16xbf16>, vector<16x16xf32> -> vector<16x16xf32>
    %cst_16 = arith.constant -1.000000e+30 : f32
    %43 = vector.broadcast %cst_16 : f32 to vector<16x16xf32>
    %44 = arith.select %7, %42, %43 : vector<16x16xi1>, vector<16x16xf32>
    %cst_17 = arith.constant dense<0xFF800000> : vector<16xf32>
    %45 = vector.multi_reduction <maximumf>, %44, %cst_17 [0] : vector<16x16xf32> to vector<16xf32>
    %46 = vector.shape_cast %45 : vector<16xf32> to vector<1x16xf32>
    %47 = vector.broadcast %46 : vector<1x16xf32> to vector<16x16xf32>
    %48 = arith.subf %44, %47 : vector<16x16xf32>
    %49 = math.exp %48 : vector<16x16xf32>
    %cst_18 = arith.constant dense<0.000000e+00> : vector<16xf32>
    %50 = vector.multi_reduction <add>, %49, %cst_18 [0] : vector<16x16xf32> to vector<16xf32>
    %51 = vector.shape_cast %50 : vector<16xf32> to vector<1x16xf32>
    %52 = tpu.reciprocal %51 : vector<1x16xf32> -> vector<1x16xf32>
    %53 = vector.broadcast %52 : vector<1x16xf32> to vector<16x16xf32>
    %54 = arith.mulf %49, %53 : vector<16x16xf32>
    %55 = arith.truncf %54 : vector<16x16xf32> to vector<16x16xbf16>
    %cst_19 = arith.constant dense<0.000000e+00> : vector<16x8xf32>
    %56 = tpu.matmul %55, %20, %cst_19 {dimension_numbers = #tpu.dot_dimension_numbers<[0], [0], [1], [1], [0, 1, 1, 1], [], []>} : vector<16x16xbf16>, vector<16x8xbf16>, vector<16x8xf32> -> vector<16x8xf32>
    %57 = vector.extract_strided_slice %17 {offsets = [0, 8], sizes = [16, 8], strides = [1, 1]} : vector<16x24xf32> to vector<16x8xf32>
    %58 = arith.truncf %57 : vector<16x8xf32> to vector<16x8xbf16>
    %cst_20 = arith.constant dense<0.000000e+00> : vector<16x128xf32>
    %59 = tpu.matmul %58, %8, %cst_20 {dimension_numbers = #tpu.dot_dimension_numbers<[1], [0], [0], [1], [0, 0, 1, 1], [], []>} : vector<16x8xbf16>, vector<8x128xbf16>, vector<16x128xf32> -> vector<16x128xf32>
    %60 = vector.extract_strided_slice %18 {offsets = [8, 0], sizes = [1, 16], strides = [1, 1]} : vector<24x16xf32> to vector<1x16xf32>
    %61 = vector.extract_strided_slice %18 {offsets = [9, 0], sizes = [1, 16], strides = [1, 1]} : vector<24x16xf32> to vector<1x16xf32>
    %62 = vector.extract_strided_slice %18 {offsets = [10, 0], sizes = [1, 16], strides = [1, 1]} : vector<24x16xf32> to vector<1x16xf32>
    %63 = vector.extract_strided_slice %18 {offsets = [11, 0], sizes = [1, 16], strides = [1, 1]} : vector<24x16xf32> to vector<1x16xf32>
    %64 = vector.extract_strided_slice %18 {offsets = [12, 0], sizes = [1, 16], strides = [1, 1]} : vector<24x16xf32> to vector<1x16xf32>
    %65 = vector.extract_strided_slice %18 {offsets = [13, 0], sizes = [1, 16], strides = [1, 1]} : vector<24x16xf32> to vector<1x16xf32>
    %66 = vector.extract_strided_slice %18 {offsets = [14, 0], sizes = [1, 16], strides = [1, 1]} : vector<24x16xf32> to vector<1x16xf32>
    %67 = vector.extract_strided_slice %18 {offsets = [15, 0], sizes = [1, 16], strides = [1, 1]} : vector<24x16xf32> to vector<1x16xf32>
    %68 = tpu.concatenate %60, %61, %62, %63, %64, %65, %66, %67 in 1 : vector<1x16xf32>, vector<1x16xf32>, vector<1x16xf32>, vector<1x16xf32>, vector<1x16xf32>, vector<1x16xf32>, vector<1x16xf32>, vector<1x16xf32> -> vector<1x128xf32>
    %c5 = arith.constant 5 : index
    %c0_21 = arith.constant 0 : index
    %69 = vector.load %arg3[%c5, %c0_21] : memref<28x128xf32, #tpu.memory_space<vmem>>, vector<1x128xf32>
    %70 = arith.addf %68, %69 : vector<1x128xf32>
    %71 = vector.broadcast %70 : vector<1x128xf32> to vector<16x128xf32>
    %72 = arith.addf %59, %71 : vector<16x128xf32>
    %cst_22 = arith.constant 2.000000e-01 : f32
    %73 = vector.broadcast %cst_22 : f32 to vector<16x128xf32>
    %74 = arith.mulf %73, %72 : vector<16x128xf32>
    %75 = arith.maximumf %72, %74 : vector<16x128xf32>
    %c2 = arith.constant 2 : index
    %c0_23 = arith.constant 0 : index
    %76 = vector.load %arg3[%c2, %c0_23] : memref<28x128xf32, #tpu.memory_space<vmem>>, vector<1x128xf32>
    %77 = vector.broadcast %76 : vector<1x128xf32> to vector<16x128xf32>
    %78 = arith.mulf %75, %77 : vector<16x128xf32>
    %79 = arith.truncf %78 : vector<16x128xf32> to vector<16x128xbf16>
    %cst_24 = arith.constant dense<0.000000e+00> : vector<16x16xf32>
    %80 = tpu.matmul %79, %9, %cst_24 {dimension_numbers = #tpu.dot_dimension_numbers<[1], [0], [0], [1], [0, 0, 1, 1], [], []>} : vector<16x128xbf16>, vector<128x16xbf16>, vector<16x16xf32> -> vector<16x16xf32>
    %cst_25 = arith.constant -1.000000e+30 : f32
    %81 = vector.broadcast %cst_25 : f32 to vector<16x16xf32>
    %82 = arith.select %7, %80, %81 : vector<16x16xi1>, vector<16x16xf32>
    %cst_26 = arith.constant dense<0xFF800000> : vector<16xf32>
    %83 = vector.multi_reduction <maximumf>, %82, %cst_26 [0] : vector<16x16xf32> to vector<16xf32>
    %84 = vector.shape_cast %83 : vector<16xf32> to vector<1x16xf32>
    %85 = vector.broadcast %84 : vector<1x16xf32> to vector<16x16xf32>
    %86 = arith.subf %82, %85 : vector<16x16xf32>
    %87 = math.exp %86 : vector<16x16xf32>
    %cst_27 = arith.constant dense<0.000000e+00> : vector<16xf32>
    %88 = vector.multi_reduction <add>, %87, %cst_27 [0] : vector<16x16xf32> to vector<16xf32>
    %89 = vector.shape_cast %88 : vector<16xf32> to vector<1x16xf32>
    %90 = tpu.reciprocal %89 : vector<1x16xf32> -> vector<1x16xf32>
    %91 = vector.broadcast %90 : vector<1x16xf32> to vector<16x16xf32>
    %92 = arith.mulf %87, %91 : vector<16x16xf32>
    %93 = arith.truncf %92 : vector<16x16xf32> to vector<16x16xbf16>
    %cst_28 = arith.constant dense<0.000000e+00> : vector<16x8xf32>
    %94 = tpu.matmul %93, %58, %cst_28 {dimension_numbers = #tpu.dot_dimension_numbers<[0], [0], [1], [1], [0, 1, 1, 1], [], []>} : vector<16x16xbf16>, vector<16x8xbf16>, vector<16x8xf32> -> vector<16x8xf32>
    %95 = vector.extract_strided_slice %17 {offsets = [0, 16], sizes = [16, 8], strides = [1, 1]} : vector<16x24xf32> to vector<16x8xf32>
    %96 = arith.truncf %95 : vector<16x8xf32> to vector<16x8xbf16>
    %cst_29 = arith.constant dense<0.000000e+00> : vector<16x128xf32>
    %97 = tpu.matmul %96, %8, %cst_29 {dimension_numbers = #tpu.dot_dimension_numbers<[1], [0], [0], [1], [0, 0, 1, 1], [], []>} : vector<16x8xbf16>, vector<8x128xbf16>, vector<16x128xf32> -> vector<16x128xf32>
    %98 = vector.extract_strided_slice %18 {offsets = [16, 0], sizes = [1, 16], strides = [1, 1]} : vector<24x16xf32> to vector<1x16xf32>
    %99 = vector.extract_strided_slice %18 {offsets = [17, 0], sizes = [1, 16], strides = [1, 1]} : vector<24x16xf32> to vector<1x16xf32>
    %100 = vector.extract_strided_slice %18 {offsets = [18, 0], sizes = [1, 16], strides = [1, 1]} : vector<24x16xf32> to vector<1x16xf32>
    %101 = vector.extract_strided_slice %18 {offsets = [19, 0], sizes = [1, 16], strides = [1, 1]} : vector<24x16xf32> to vector<1x16xf32>
    %102 = vector.extract_strided_slice %18 {offsets = [20, 0], sizes = [1, 16], strides = [1, 1]} : vector<24x16xf32> to vector<1x16xf32>
    %103 = vector.extract_strided_slice %18 {offsets = [21, 0], sizes = [1, 16], strides = [1, 1]} : vector<24x16xf32> to vector<1x16xf32>
    %104 = vector.extract_strided_slice %18 {offsets = [22, 0], sizes = [1, 16], strides = [1, 1]} : vector<24x16xf32> to vector<1x16xf32>
    %105 = vector.extract_strided_slice %18 {offsets = [23, 0], sizes = [1, 16], strides = [1, 1]} : vector<24x16xf32> to vector<1x16xf32>
    %106 = tpu.concatenate %98, %99, %100, %101, %102, %103, %104, %105 in 1 : vector<1x16xf32>, vector<1x16xf32>, vector<1x16xf32>, vector<1x16xf32>, vector<1x16xf32>, vector<1x16xf32>, vector<1x16xf32>, vector<1x16xf32> -> vector<1x128xf32>
    %c6 = arith.constant 6 : index
    %c0_30 = arith.constant 0 : index
    %107 = vector.load %arg3[%c6, %c0_30] : memref<28x128xf32, #tpu.memory_space<vmem>>, vector<1x128xf32>
    %108 = arith.addf %106, %107 : vector<1x128xf32>
    %109 = vector.broadcast %108 : vector<1x128xf32> to vector<16x128xf32>
    %110 = arith.addf %97, %109 : vector<16x128xf32>
    %cst_31 = arith.constant 2.000000e-01 : f32
    %111 = vector.broadcast %cst_31 : f32 to vector<16x128xf32>
    %112 = arith.mulf %111, %110 : vector<16x128xf32>
    %113 = arith.maximumf %110, %112 : vector<16x128xf32>
    %c3 = arith.constant 3 : index
    %c0_32 = arith.constant 0 : index
    %114 = vector.load %arg3[%c3, %c0_32] : memref<28x128xf32, #tpu.memory_space<vmem>>, vector<1x128xf32>
    %115 = vector.broadcast %114 : vector<1x128xf32> to vector<16x128xf32>
    %116 = arith.mulf %113, %115 : vector<16x128xf32>
    %117 = arith.truncf %116 : vector<16x128xf32> to vector<16x128xbf16>
    %cst_33 = arith.constant dense<0.000000e+00> : vector<16x16xf32>
    %118 = tpu.matmul %117, %9, %cst_33 {dimension_numbers = #tpu.dot_dimension_numbers<[1], [0], [0], [1], [0, 0, 1, 1], [], []>} : vector<16x128xbf16>, vector<128x16xbf16>, vector<16x16xf32> -> vector<16x16xf32>
    %cst_34 = arith.constant -1.000000e+30 : f32
    %119 = vector.broadcast %cst_34 : f32 to vector<16x16xf32>
    %120 = arith.select %7, %118, %119 : vector<16x16xi1>, vector<16x16xf32>
    %cst_35 = arith.constant dense<0xFF800000> : vector<16xf32>
    %121 = vector.multi_reduction <maximumf>, %120, %cst_35 [0] : vector<16x16xf32> to vector<16xf32>
    %122 = vector.shape_cast %121 : vector<16xf32> to vector<1x16xf32>
    %123 = vector.broadcast %122 : vector<1x16xf32> to vector<16x16xf32>
    %124 = arith.subf %120, %123 : vector<16x16xf32>
    %125 = math.exp %124 : vector<16x16xf32>
    %cst_36 = arith.constant dense<0.000000e+00> : vector<16xf32>
    %126 = vector.multi_reduction <add>, %125, %cst_36 [0] : vector<16x16xf32> to vector<16xf32>
    %127 = vector.shape_cast %126 : vector<16xf32> to vector<1x16xf32>
    %128 = tpu.reciprocal %127 : vector<1x16xf32> -> vector<1x16xf32>
    %129 = vector.broadcast %128 : vector<1x16xf32> to vector<16x16xf32>
    %130 = arith.mulf %125, %129 : vector<16x16xf32>
    %131 = arith.truncf %130 : vector<16x16xf32> to vector<16x16xbf16>
    %cst_37 = arith.constant dense<0.000000e+00> : vector<16x8xf32>
    %132 = tpu.matmul %131, %96, %cst_37 {dimension_numbers = #tpu.dot_dimension_numbers<[0], [0], [1], [1], [0, 1, 1, 1], [], []>} : vector<16x16xbf16>, vector<16x8xbf16>, vector<16x8xf32> -> vector<16x8xf32>
    %133 = tpu.concatenate %56, %94, %132 in 1 : vector<16x8xf32>, vector<16x8xf32>, vector<16x8xf32> -> vector<16x24xf32>
    %c7 = arith.constant 7 : index
    %c0_38 = arith.constant 0 : index
    %134 = vector.load %arg3[%c7, %c0_38] : memref<28x128xf32, #tpu.memory_space<vmem>>, vector<1x24xf32>
    %c8 = arith.constant 8 : index
    %c0_39 = arith.constant 0 : index
    %135 = vector.load %arg3[%c8, %c0_39] : memref<28x128xf32, #tpu.memory_space<vmem>>, vector<1x24xf32>
    %136 = vector.broadcast %134 : vector<1x24xf32> to vector<16x24xf32>
    %137 = arith.mulf %133, %136 : vector<16x24xf32>
    %138 = vector.broadcast %135 : vector<1x24xf32> to vector<16x24xf32>
    %139 = arith.addf %137, %138 : vector<16x24xf32>
    %cst_40 = arith.constant 0.000000e+00 : f32
    %140 = vector.broadcast %cst_40 : f32 to vector<16x24xf32>
    %141 = arith.maximumf %139, %140 : vector<16x24xf32>
    %142 = arith.truncf %141 : vector<16x24xf32> to vector<16x24xbf16>
    %c48 = arith.constant 48 : index
    %c0_41 = arith.constant 0 : index
    %143 = vector.load %arg2[%c48, %c0_41] : memref<384x128xbf16, #tpu.memory_space<vmem>>, vector<24x24xbf16>
    %c80 = arith.constant 80 : index
    %c0_42 = arith.constant 0 : index
    %144 = vector.load %arg2[%c80, %c0_42] : memref<384x128xbf16, #tpu.memory_space<vmem>>, vector<24x24xbf16>
    %c9 = arith.constant 9 : index
    %c0_43 = arith.constant 0 : index
    %145 = vector.load %arg3[%c9, %c0_43] : memref<28x128xf32, #tpu.memory_space<vmem>>, vector<1x24xf32>
    %cst_44 = arith.constant dense<0.000000e+00> : vector<16x24xf32>
    %146 = tpu.matmul %142, %143, %cst_44 {dimension_numbers = #tpu.dot_dimension_numbers<[1], [0], [0], [1], [0, 0, 1, 1], [], []>} : vector<16x24xbf16>, vector<24x24xbf16>, vector<16x24xf32> -> vector<16x24xf32>
    %147 = vector.broadcast %145 : vector<1x24xf32> to vector<16x24xf32>
    %148 = arith.addf %146, %147 : vector<16x24xf32>
    %cst_45 = arith.constant dense<0.000000e+00> : vector<24x16xf32>
    %149 = tpu.matmul %144, %142, %cst_45 {dimension_numbers = #tpu.dot_dimension_numbers<[1], [1], [0], [0], [0, 0, 1, 0], [], []>} : vector<24x24xbf16>, vector<16x24xbf16>, vector<24x16xf32> -> vector<24x16xf32>
    %150 = vector.extract_strided_slice %148 {offsets = [0, 0], sizes = [16, 8], strides = [1, 1]} : vector<16x24xf32> to vector<16x8xf32>
    %151 = arith.truncf %150 : vector<16x8xf32> to vector<16x8xbf16>
    %cst_46 = arith.constant dense<0.000000e+00> : vector<16x128xf32>
    %152 = tpu.matmul %151, %8, %cst_46 {dimension_numbers = #tpu.dot_dimension_numbers<[1], [0], [0], [1], [0, 0, 1, 1], [], []>} : vector<16x8xbf16>, vector<8x128xbf16>, vector<16x128xf32> -> vector<16x128xf32>
    %153 = vector.extract_strided_slice %149 {offsets = [0, 0], sizes = [1, 16], strides = [1, 1]} : vector<24x16xf32> to vector<1x16xf32>
    %154 = vector.extract_strided_slice %149 {offsets = [1, 0], sizes = [1, 16], strides = [1, 1]} : vector<24x16xf32> to vector<1x16xf32>
    %155 = vector.extract_strided_slice %149 {offsets = [2, 0], sizes = [1, 16], strides = [1, 1]} : vector<24x16xf32> to vector<1x16xf32>
    %156 = vector.extract_strided_slice %149 {offsets = [3, 0], sizes = [1, 16], strides = [1, 1]} : vector<24x16xf32> to vector<1x16xf32>
    %157 = vector.extract_strided_slice %149 {offsets = [4, 0], sizes = [1, 16], strides = [1, 1]} : vector<24x16xf32> to vector<1x16xf32>
    %158 = vector.extract_strided_slice %149 {offsets = [5, 0], sizes = [1, 16], strides = [1, 1]} : vector<24x16xf32> to vector<1x16xf32>
    %159 = vector.extract_strided_slice %149 {offsets = [6, 0], sizes = [1, 16], strides = [1, 1]} : vector<24x16xf32> to vector<1x16xf32>
    %160 = vector.extract_strided_slice %149 {offsets = [7, 0], sizes = [1, 16], strides = [1, 1]} : vector<24x16xf32> to vector<1x16xf32>
    %161 = tpu.concatenate %153, %154, %155, %156, %157, %158, %159, %160 in 1 : vector<1x16xf32>, vector<1x16xf32>, vector<1x16xf32>, vector<1x16xf32>, vector<1x16xf32>, vector<1x16xf32>, vector<1x16xf32>, vector<1x16xf32> -> vector<1x128xf32>
    %c13 = arith.constant 13 : index
    %c0_47 = arith.constant 0 : index
    %162 = vector.load %arg3[%c13, %c0_47] : memref<28x128xf32, #tpu.memory_space<vmem>>, vector<1x128xf32>
    %163 = arith.addf %161, %162 : vector<1x128xf32>
    %164 = vector.broadcast %163 : vector<1x128xf32> to vector<16x128xf32>
    %165 = arith.addf %152, %164 : vector<16x128xf32>
    %cst_48 = arith.constant 2.000000e-01 : f32
    %166 = vector.broadcast %cst_48 : f32 to vector<16x128xf32>
    %167 = arith.mulf %166, %165 : vector<16x128xf32>
    %168 = arith.maximumf %165, %167 : vector<16x128xf32>
    %c10 = arith.constant 10 : index
    %c0_49 = arith.constant 0 : index
    %169 = vector.load %arg3[%c10, %c0_49] : memref<28x128xf32, #tpu.memory_space<vmem>>, vector<1x128xf32>
    %170 = vector.broadcast %169 : vector<1x128xf32> to vector<16x128xf32>
    %171 = arith.mulf %168, %170 : vector<16x128xf32>
    %172 = arith.truncf %171 : vector<16x128xf32> to vector<16x128xbf16>
    %cst_50 = arith.constant dense<0.000000e+00> : vector<16x16xf32>
    %173 = tpu.matmul %172, %9, %cst_50 {dimension_numbers = #tpu.dot_dimension_numbers<[1], [0], [0], [1], [0, 0, 1, 1], [], []>} : vector<16x128xbf16>, vector<128x16xbf16>, vector<16x16xf32> -> vector<16x16xf32>
    %cst_51 = arith.constant -1.000000e+30 : f32
    %174 = vector.broadcast %cst_51 : f32 to vector<16x16xf32>
    %175 = arith.select %7, %173, %174 : vector<16x16xi1>, vector<16x16xf32>
    %cst_52 = arith.constant dense<0xFF800000> : vector<16xf32>
    %176 = vector.multi_reduction <maximumf>, %175, %cst_52 [0] : vector<16x16xf32> to vector<16xf32>
    %177 = vector.shape_cast %176 : vector<16xf32> to vector<1x16xf32>
    %178 = vector.broadcast %177 : vector<1x16xf32> to vector<16x16xf32>
    %179 = arith.subf %175, %178 : vector<16x16xf32>
    %180 = math.exp %179 : vector<16x16xf32>
    %cst_53 = arith.constant dense<0.000000e+00> : vector<16xf32>
    %181 = vector.multi_reduction <add>, %180, %cst_53 [0] : vector<16x16xf32> to vector<16xf32>
    %182 = vector.shape_cast %181 : vector<16xf32> to vector<1x16xf32>
    %183 = tpu.reciprocal %182 : vector<1x16xf32> -> vector<1x16xf32>
    %184 = vector.broadcast %183 : vector<1x16xf32> to vector<16x16xf32>
    %185 = arith.mulf %180, %184 : vector<16x16xf32>
    %186 = arith.truncf %185 : vector<16x16xf32> to vector<16x16xbf16>
    %cst_54 = arith.constant dense<0.000000e+00> : vector<16x8xf32>
    %187 = tpu.matmul %186, %151, %cst_54 {dimension_numbers = #tpu.dot_dimension_numbers<[0], [0], [1], [1], [0, 1, 1, 1], [], []>} : vector<16x16xbf16>, vector<16x8xbf16>, vector<16x8xf32> -> vector<16x8xf32>
    %188 = vector.extract_strided_slice %148 {offsets = [0, 8], sizes = [16, 8], strides = [1, 1]} : vector<16x24xf32> to vector<16x8xf32>
    %189 = arith.truncf %188 : vector<16x8xf32> to vector<16x8xbf16>
    %cst_55 = arith.constant dense<0.000000e+00> : vector<16x128xf32>
    %190 = tpu.matmul %189, %8, %cst_55 {dimension_numbers = #tpu.dot_dimension_numbers<[1], [0], [0], [1], [0, 0, 1, 1], [], []>} : vector<16x8xbf16>, vector<8x128xbf16>, vector<16x128xf32> -> vector<16x128xf32>
    %191 = vector.extract_strided_slice %149 {offsets = [8, 0], sizes = [1, 16], strides = [1, 1]} : vector<24x16xf32> to vector<1x16xf32>
    %192 = vector.extract_strided_slice %149 {offsets = [9, 0], sizes = [1, 16], strides = [1, 1]} : vector<24x16xf32> to vector<1x16xf32>
    %193 = vector.extract_strided_slice %149 {offsets = [10, 0], sizes = [1, 16], strides = [1, 1]} : vector<24x16xf32> to vector<1x16xf32>
    %194 = vector.extract_strided_slice %149 {offsets = [11, 0], sizes = [1, 16], strides = [1, 1]} : vector<24x16xf32> to vector<1x16xf32>
    %195 = vector.extract_strided_slice %149 {offsets = [12, 0], sizes = [1, 16], strides = [1, 1]} : vector<24x16xf32> to vector<1x16xf32>
    %196 = vector.extract_strided_slice %149 {offsets = [13, 0], sizes = [1, 16], strides = [1, 1]} : vector<24x16xf32> to vector<1x16xf32>
    %197 = vector.extract_strided_slice %149 {offsets = [14, 0], sizes = [1, 16], strides = [1, 1]} : vector<24x16xf32> to vector<1x16xf32>
    %198 = vector.extract_strided_slice %149 {offsets = [15, 0], sizes = [1, 16], strides = [1, 1]} : vector<24x16xf32> to vector<1x16xf32>
    %199 = tpu.concatenate %191, %192, %193, %194, %195, %196, %197, %198 in 1 : vector<1x16xf32>, vector<1x16xf32>, vector<1x16xf32>, vector<1x16xf32>, vector<1x16xf32>, vector<1x16xf32>, vector<1x16xf32>, vector<1x16xf32> -> vector<1x128xf32>
    %c14 = arith.constant 14 : index
    %c0_56 = arith.constant 0 : index
    %200 = vector.load %arg3[%c14, %c0_56] : memref<28x128xf32, #tpu.memory_space<vmem>>, vector<1x128xf32>
    %201 = arith.addf %199, %200 : vector<1x128xf32>
    %202 = vector.broadcast %201 : vector<1x128xf32> to vector<16x128xf32>
    %203 = arith.addf %190, %202 : vector<16x128xf32>
    %cst_57 = arith.constant 2.000000e-01 : f32
    %204 = vector.broadcast %cst_57 : f32 to vector<16x128xf32>
    %205 = arith.mulf %204, %203 : vector<16x128xf32>
    %206 = arith.maximumf %203, %205 : vector<16x128xf32>
    %c11 = arith.constant 11 : index
    %c0_58 = arith.constant 0 : index
    %207 = vector.load %arg3[%c11, %c0_58] : memref<28x128xf32, #tpu.memory_space<vmem>>, vector<1x128xf32>
    %208 = vector.broadcast %207 : vector<1x128xf32> to vector<16x128xf32>
    %209 = arith.mulf %206, %208 : vector<16x128xf32>
    %210 = arith.truncf %209 : vector<16x128xf32> to vector<16x128xbf16>
    %cst_59 = arith.constant dense<0.000000e+00> : vector<16x16xf32>
    %211 = tpu.matmul %210, %9, %cst_59 {dimension_numbers = #tpu.dot_dimension_numbers<[1], [0], [0], [1], [0, 0, 1, 1], [], []>} : vector<16x128xbf16>, vector<128x16xbf16>, vector<16x16xf32> -> vector<16x16xf32>
    %cst_60 = arith.constant -1.000000e+30 : f32
    %212 = vector.broadcast %cst_60 : f32 to vector<16x16xf32>
    %213 = arith.select %7, %211, %212 : vector<16x16xi1>, vector<16x16xf32>
    %cst_61 = arith.constant dense<0xFF800000> : vector<16xf32>
    %214 = vector.multi_reduction <maximumf>, %213, %cst_61 [0] : vector<16x16xf32> to vector<16xf32>
    %215 = vector.shape_cast %214 : vector<16xf32> to vector<1x16xf32>
    %216 = vector.broadcast %215 : vector<1x16xf32> to vector<16x16xf32>
    %217 = arith.subf %213, %216 : vector<16x16xf32>
    %218 = math.exp %217 : vector<16x16xf32>
    %cst_62 = arith.constant dense<0.000000e+00> : vector<16xf32>
    %219 = vector.multi_reduction <add>, %218, %cst_62 [0] : vector<16x16xf32> to vector<16xf32>
    %220 = vector.shape_cast %219 : vector<16xf32> to vector<1x16xf32>
    %221 = tpu.reciprocal %220 : vector<1x16xf32> -> vector<1x16xf32>
    %222 = vector.broadcast %221 : vector<1x16xf32> to vector<16x16xf32>
    %223 = arith.mulf %218, %222 : vector<16x16xf32>
    %224 = arith.truncf %223 : vector<16x16xf32> to vector<16x16xbf16>
    %cst_63 = arith.constant dense<0.000000e+00> : vector<16x8xf32>
    %225 = tpu.matmul %224, %189, %cst_63 {dimension_numbers = #tpu.dot_dimension_numbers<[0], [0], [1], [1], [0, 1, 1, 1], [], []>} : vector<16x16xbf16>, vector<16x8xbf16>, vector<16x8xf32> -> vector<16x8xf32>
    %226 = vector.extract_strided_slice %148 {offsets = [0, 16], sizes = [16, 8], strides = [1, 1]} : vector<16x24xf32> to vector<16x8xf32>
    %227 = arith.truncf %226 : vector<16x8xf32> to vector<16x8xbf16>
    %cst_64 = arith.constant dense<0.000000e+00> : vector<16x128xf32>
    %228 = tpu.matmul %227, %8, %cst_64 {dimension_numbers = #tpu.dot_dimension_numbers<[1], [0], [0], [1], [0, 0, 1, 1], [], []>} : vector<16x8xbf16>, vector<8x128xbf16>, vector<16x128xf32> -> vector<16x128xf32>
    %229 = vector.extract_strided_slice %149 {offsets = [16, 0], sizes = [1, 16], strides = [1, 1]} : vector<24x16xf32> to vector<1x16xf32>
    %230 = vector.extract_strided_slice %149 {offsets = [17, 0], sizes = [1, 16], strides = [1, 1]} : vector<24x16xf32> to vector<1x16xf32>
    %231 = vector.extract_strided_slice %149 {offsets = [18, 0], sizes = [1, 16], strides = [1, 1]} : vector<24x16xf32> to vector<1x16xf32>
    %232 = vector.extract_strided_slice %149 {offsets = [19, 0], sizes = [1, 16], strides = [1, 1]} : vector<24x16xf32> to vector<1x16xf32>
    %233 = vector.extract_strided_slice %149 {offsets = [20, 0], sizes = [1, 16], strides = [1, 1]} : vector<24x16xf32> to vector<1x16xf32>
    %234 = vector.extract_strided_slice %149 {offsets = [21, 0], sizes = [1, 16], strides = [1, 1]} : vector<24x16xf32> to vector<1x16xf32>
    %235 = vector.extract_strided_slice %149 {offsets = [22, 0], sizes = [1, 16], strides = [1, 1]} : vector<24x16xf32> to vector<1x16xf32>
    %236 = vector.extract_strided_slice %149 {offsets = [23, 0], sizes = [1, 16], strides = [1, 1]} : vector<24x16xf32> to vector<1x16xf32>
    %237 = tpu.concatenate %229, %230, %231, %232, %233, %234, %235, %236 in 1 : vector<1x16xf32>, vector<1x16xf32>, vector<1x16xf32>, vector<1x16xf32>, vector<1x16xf32>, vector<1x16xf32>, vector<1x16xf32>, vector<1x16xf32> -> vector<1x128xf32>
    %c15 = arith.constant 15 : index
    %c0_65 = arith.constant 0 : index
    %238 = vector.load %arg3[%c15, %c0_65] : memref<28x128xf32, #tpu.memory_space<vmem>>, vector<1x128xf32>
    %239 = arith.addf %237, %238 : vector<1x128xf32>
    %240 = vector.broadcast %239 : vector<1x128xf32> to vector<16x128xf32>
    %241 = arith.addf %228, %240 : vector<16x128xf32>
    %cst_66 = arith.constant 2.000000e-01 : f32
    %242 = vector.broadcast %cst_66 : f32 to vector<16x128xf32>
    %243 = arith.mulf %242, %241 : vector<16x128xf32>
    %244 = arith.maximumf %241, %243 : vector<16x128xf32>
    %c12 = arith.constant 12 : index
    %c0_67 = arith.constant 0 : index
    %245 = vector.load %arg3[%c12, %c0_67] : memref<28x128xf32, #tpu.memory_space<vmem>>, vector<1x128xf32>
    %246 = vector.broadcast %245 : vector<1x128xf32> to vector<16x128xf32>
    %247 = arith.mulf %244, %246 : vector<16x128xf32>
    %248 = arith.truncf %247 : vector<16x128xf32> to vector<16x128xbf16>
    %cst_68 = arith.constant dense<0.000000e+00> : vector<16x16xf32>
    %249 = tpu.matmul %248, %9, %cst_68 {dimension_numbers = #tpu.dot_dimension_numbers<[1], [0], [0], [1], [0, 0, 1, 1], [], []>} : vector<16x128xbf16>, vector<128x16xbf16>, vector<16x16xf32> -> vector<16x16xf32>
    %cst_69 = arith.constant -1.000000e+30 : f32
    %250 = vector.broadcast %cst_69 : f32 to vector<16x16xf32>
    %251 = arith.select %7, %249, %250 : vector<16x16xi1>, vector<16x16xf32>
    %cst_70 = arith.constant dense<0xFF800000> : vector<16xf32>
    %252 = vector.multi_reduction <maximumf>, %251, %cst_70 [0] : vector<16x16xf32> to vector<16xf32>
    %253 = vector.shape_cast %252 : vector<16xf32> to vector<1x16xf32>
    %254 = vector.broadcast %253 : vector<1x16xf32> to vector<16x16xf32>
    %255 = arith.subf %251, %254 : vector<16x16xf32>
    %256 = math.exp %255 : vector<16x16xf32>
    %cst_71 = arith.constant dense<0.000000e+00> : vector<16xf32>
    %257 = vector.multi_reduction <add>, %256, %cst_71 [0] : vector<16x16xf32> to vector<16xf32>
    %258 = vector.shape_cast %257 : vector<16xf32> to vector<1x16xf32>
    %259 = tpu.reciprocal %258 : vector<1x16xf32> -> vector<1x16xf32>
    %260 = vector.broadcast %259 : vector<1x16xf32> to vector<16x16xf32>
    %261 = arith.mulf %256, %260 : vector<16x16xf32>
    %262 = arith.truncf %261 : vector<16x16xf32> to vector<16x16xbf16>
    %cst_72 = arith.constant dense<0.000000e+00> : vector<16x8xf32>
    %263 = tpu.matmul %262, %227, %cst_72 {dimension_numbers = #tpu.dot_dimension_numbers<[0], [0], [1], [1], [0, 1, 1, 1], [], []>} : vector<16x16xbf16>, vector<16x8xbf16>, vector<16x8xf32> -> vector<16x8xf32>
    %264 = tpu.concatenate %187, %225, %263 in 1 : vector<16x8xf32>, vector<16x8xf32>, vector<16x8xf32> -> vector<16x24xf32>
    %c16_73 = arith.constant 16 : index
    %c0_74 = arith.constant 0 : index
    %265 = vector.load %arg3[%c16_73, %c0_74] : memref<28x128xf32, #tpu.memory_space<vmem>>, vector<1x24xf32>
    %c17 = arith.constant 17 : index
    %c0_75 = arith.constant 0 : index
    %266 = vector.load %arg3[%c17, %c0_75] : memref<28x128xf32, #tpu.memory_space<vmem>>, vector<1x24xf32>
    %267 = vector.broadcast %265 : vector<1x24xf32> to vector<16x24xf32>
    %268 = arith.mulf %264, %267 : vector<16x24xf32>
    %269 = vector.broadcast %266 : vector<1x24xf32> to vector<16x24xf32>
    %270 = arith.addf %268, %269 : vector<16x24xf32>
    %cst_76 = arith.constant 0.000000e+00 : f32
    %271 = vector.broadcast %cst_76 : f32 to vector<16x24xf32>
    %272 = arith.maximumf %270, %271 : vector<16x24xf32>
    %273 = arith.truncf %272 : vector<16x24xf32> to vector<16x24xbf16>
    %c112 = arith.constant 112 : index
    %c0_77 = arith.constant 0 : index
    %274 = vector.load %arg2[%c112, %c0_77] : memref<384x128xbf16, #tpu.memory_space<vmem>>, vector<24x24xbf16>
    %c144 = arith.constant 144 : index
    %c0_78 = arith.constant 0 : index
    %275 = vector.load %arg2[%c144, %c0_78] : memref<384x128xbf16, #tpu.memory_space<vmem>>, vector<24x24xbf16>
    %c18 = arith.constant 18 : index
    %c0_79 = arith.constant 0 : index
    %276 = vector.load %arg3[%c18, %c0_79] : memref<28x128xf32, #tpu.memory_space<vmem>>, vector<1x24xf32>
    %cst_80 = arith.constant dense<0.000000e+00> : vector<16x24xf32>
    %277 = tpu.matmul %273, %274, %cst_80 {dimension_numbers = #tpu.dot_dimension_numbers<[1], [0], [0], [1], [0, 0, 1, 1], [], []>} : vector<16x24xbf16>, vector<24x24xbf16>, vector<16x24xf32> -> vector<16x24xf32>
    %278 = vector.broadcast %276 : vector<1x24xf32> to vector<16x24xf32>
    %279 = arith.addf %277, %278 : vector<16x24xf32>
    %cst_81 = arith.constant dense<0.000000e+00> : vector<24x16xf32>
    %280 = tpu.matmul %275, %273, %cst_81 {dimension_numbers = #tpu.dot_dimension_numbers<[1], [1], [0], [0], [0, 0, 1, 0], [], []>} : vector<24x24xbf16>, vector<16x24xbf16>, vector<24x16xf32> -> vector<24x16xf32>
    %281 = vector.extract_strided_slice %279 {offsets = [0, 0], sizes = [16, 8], strides = [1, 1]} : vector<16x24xf32> to vector<16x8xf32>
    %282 = arith.truncf %281 : vector<16x8xf32> to vector<16x8xbf16>
    %cst_82 = arith.constant dense<0.000000e+00> : vector<16x128xf32>
    %283 = tpu.matmul %282, %8, %cst_82 {dimension_numbers = #tpu.dot_dimension_numbers<[1], [0], [0], [1], [0, 0, 1, 1], [], []>} : vector<16x8xbf16>, vector<8x128xbf16>, vector<16x128xf32> -> vector<16x128xf32>
    %284 = vector.extract_strided_slice %280 {offsets = [0, 0], sizes = [1, 16], strides = [1, 1]} : vector<24x16xf32> to vector<1x16xf32>
    %285 = vector.extract_strided_slice %280 {offsets = [1, 0], sizes = [1, 16], strides = [1, 1]} : vector<24x16xf32> to vector<1x16xf32>
    %286 = vector.extract_strided_slice %280 {offsets = [2, 0], sizes = [1, 16], strides = [1, 1]} : vector<24x16xf32> to vector<1x16xf32>
    %287 = vector.extract_strided_slice %280 {offsets = [3, 0], sizes = [1, 16], strides = [1, 1]} : vector<24x16xf32> to vector<1x16xf32>
    %288 = vector.extract_strided_slice %280 {offsets = [4, 0], sizes = [1, 16], strides = [1, 1]} : vector<24x16xf32> to vector<1x16xf32>
    %289 = vector.extract_strided_slice %280 {offsets = [5, 0], sizes = [1, 16], strides = [1, 1]} : vector<24x16xf32> to vector<1x16xf32>
    %290 = vector.extract_strided_slice %280 {offsets = [6, 0], sizes = [1, 16], strides = [1, 1]} : vector<24x16xf32> to vector<1x16xf32>
    %291 = vector.extract_strided_slice %280 {offsets = [7, 0], sizes = [1, 16], strides = [1, 1]} : vector<24x16xf32> to vector<1x16xf32>
    %292 = tpu.concatenate %284, %285, %286, %287, %288, %289, %290, %291 in 1 : vector<1x16xf32>, vector<1x16xf32>, vector<1x16xf32>, vector<1x16xf32>, vector<1x16xf32>, vector<1x16xf32>, vector<1x16xf32>, vector<1x16xf32> -> vector<1x128xf32>
    %c22 = arith.constant 22 : index
    %c0_83 = arith.constant 0 : index
    %293 = vector.load %arg3[%c22, %c0_83] : memref<28x128xf32, #tpu.memory_space<vmem>>, vector<1x128xf32>
    %294 = arith.addf %292, %293 : vector<1x128xf32>
    %295 = vector.broadcast %294 : vector<1x128xf32> to vector<16x128xf32>
    %296 = arith.addf %283, %295 : vector<16x128xf32>
    %cst_84 = arith.constant 2.000000e-01 : f32
    %297 = vector.broadcast %cst_84 : f32 to vector<16x128xf32>
    %298 = arith.mulf %297, %296 : vector<16x128xf32>
    %299 = arith.maximumf %296, %298 : vector<16x128xf32>
    %c19 = arith.constant 19 : index
    %c0_85 = arith.constant 0 : index
    %300 = vector.load %arg3[%c19, %c0_85] : memref<28x128xf32, #tpu.memory_space<vmem>>, vector<1x128xf32>
    %301 = vector.broadcast %300 : vector<1x128xf32> to vector<16x128xf32>
    %302 = arith.mulf %299, %301 : vector<16x128xf32>
    %303 = arith.truncf %302 : vector<16x128xf32> to vector<16x128xbf16>
    %cst_86 = arith.constant dense<0.000000e+00> : vector<16x16xf32>
    %304 = tpu.matmul %303, %9, %cst_86 {dimension_numbers = #tpu.dot_dimension_numbers<[1], [0], [0], [1], [0, 0, 1, 1], [], []>} : vector<16x128xbf16>, vector<128x16xbf16>, vector<16x16xf32> -> vector<16x16xf32>
    %cst_87 = arith.constant -1.000000e+30 : f32
    %305 = vector.broadcast %cst_87 : f32 to vector<16x16xf32>
    %306 = arith.select %7, %304, %305 : vector<16x16xi1>, vector<16x16xf32>
    %cst_88 = arith.constant dense<0xFF800000> : vector<16xf32>
    %307 = vector.multi_reduction <maximumf>, %306, %cst_88 [0] : vector<16x16xf32> to vector<16xf32>
    %308 = vector.shape_cast %307 : vector<16xf32> to vector<1x16xf32>
    %309 = vector.broadcast %308 : vector<1x16xf32> to vector<16x16xf32>
    %310 = arith.subf %306, %309 : vector<16x16xf32>
    %311 = math.exp %310 : vector<16x16xf32>
    %cst_89 = arith.constant dense<0.000000e+00> : vector<16xf32>
    %312 = vector.multi_reduction <add>, %311, %cst_89 [0] : vector<16x16xf32> to vector<16xf32>
    %313 = vector.shape_cast %312 : vector<16xf32> to vector<1x16xf32>
    %314 = tpu.reciprocal %313 : vector<1x16xf32> -> vector<1x16xf32>
    %315 = vector.broadcast %314 : vector<1x16xf32> to vector<16x16xf32>
    %316 = arith.mulf %311, %315 : vector<16x16xf32>
    %317 = arith.truncf %316 : vector<16x16xf32> to vector<16x16xbf16>
    %cst_90 = arith.constant dense<0.000000e+00> : vector<16x8xf32>
    %318 = tpu.matmul %317, %282, %cst_90 {dimension_numbers = #tpu.dot_dimension_numbers<[0], [0], [1], [1], [0, 1, 1, 1], [], []>} : vector<16x16xbf16>, vector<16x8xbf16>, vector<16x8xf32> -> vector<16x8xf32>
    %319 = vector.extract_strided_slice %279 {offsets = [0, 8], sizes = [16, 8], strides = [1, 1]} : vector<16x24xf32> to vector<16x8xf32>
    %320 = arith.truncf %319 : vector<16x8xf32> to vector<16x8xbf16>
    %cst_91 = arith.constant dense<0.000000e+00> : vector<16x128xf32>
    %321 = tpu.matmul %320, %8, %cst_91 {dimension_numbers = #tpu.dot_dimension_numbers<[1], [0], [0], [1], [0, 0, 1, 1], [], []>} : vector<16x8xbf16>, vector<8x128xbf16>, vector<16x128xf32> -> vector<16x128xf32>
    %322 = vector.extract_strided_slice %280 {offsets = [8, 0], sizes = [1, 16], strides = [1, 1]} : vector<24x16xf32> to vector<1x16xf32>
    %323 = vector.extract_strided_slice %280 {offsets = [9, 0], sizes = [1, 16], strides = [1, 1]} : vector<24x16xf32> to vector<1x16xf32>
    %324 = vector.extract_strided_slice %280 {offsets = [10, 0], sizes = [1, 16], strides = [1, 1]} : vector<24x16xf32> to vector<1x16xf32>
    %325 = vector.extract_strided_slice %280 {offsets = [11, 0], sizes = [1, 16], strides = [1, 1]} : vector<24x16xf32> to vector<1x16xf32>
    %326 = vector.extract_strided_slice %280 {offsets = [12, 0], sizes = [1, 16], strides = [1, 1]} : vector<24x16xf32> to vector<1x16xf32>
    %327 = vector.extract_strided_slice %280 {offsets = [13, 0], sizes = [1, 16], strides = [1, 1]} : vector<24x16xf32> to vector<1x16xf32>
    %328 = vector.extract_strided_slice %280 {offsets = [14, 0], sizes = [1, 16], strides = [1, 1]} : vector<24x16xf32> to vector<1x16xf32>
    %329 = vector.extract_strided_slice %280 {offsets = [15, 0], sizes = [1, 16], strides = [1, 1]} : vector<24x16xf32> to vector<1x16xf32>
    %330 = tpu.concatenate %322, %323, %324, %325, %326, %327, %328, %329 in 1 : vector<1x16xf32>, vector<1x16xf32>, vector<1x16xf32>, vector<1x16xf32>, vector<1x16xf32>, vector<1x16xf32>, vector<1x16xf32>, vector<1x16xf32> -> vector<1x128xf32>
    %c23 = arith.constant 23 : index
    %c0_92 = arith.constant 0 : index
    %331 = vector.load %arg3[%c23, %c0_92] : memref<28x128xf32, #tpu.memory_space<vmem>>, vector<1x128xf32>
    %332 = arith.addf %330, %331 : vector<1x128xf32>
    %333 = vector.broadcast %332 : vector<1x128xf32> to vector<16x128xf32>
    %334 = arith.addf %321, %333 : vector<16x128xf32>
    %cst_93 = arith.constant 2.000000e-01 : f32
    %335 = vector.broadcast %cst_93 : f32 to vector<16x128xf32>
    %336 = arith.mulf %335, %334 : vector<16x128xf32>
    %337 = arith.maximumf %334, %336 : vector<16x128xf32>
    %c20 = arith.constant 20 : index
    %c0_94 = arith.constant 0 : index
    %338 = vector.load %arg3[%c20, %c0_94] : memref<28x128xf32, #tpu.memory_space<vmem>>, vector<1x128xf32>
    %339 = vector.broadcast %338 : vector<1x128xf32> to vector<16x128xf32>
    %340 = arith.mulf %337, %339 : vector<16x128xf32>
    %341 = arith.truncf %340 : vector<16x128xf32> to vector<16x128xbf16>
    %cst_95 = arith.constant dense<0.000000e+00> : vector<16x16xf32>
    %342 = tpu.matmul %341, %9, %cst_95 {dimension_numbers = #tpu.dot_dimension_numbers<[1], [0], [0], [1], [0, 0, 1, 1], [], []>} : vector<16x128xbf16>, vector<128x16xbf16>, vector<16x16xf32> -> vector<16x16xf32>
    %cst_96 = arith.constant -1.000000e+30 : f32
    %343 = vector.broadcast %cst_96 : f32 to vector<16x16xf32>
    %344 = arith.select %7, %342, %343 : vector<16x16xi1>, vector<16x16xf32>
    %cst_97 = arith.constant dense<0xFF800000> : vector<16xf32>
    %345 = vector.multi_reduction <maximumf>, %344, %cst_97 [0] : vector<16x16xf32> to vector<16xf32>
    %346 = vector.shape_cast %345 : vector<16xf32> to vector<1x16xf32>
    %347 = vector.broadcast %346 : vector<1x16xf32> to vector<16x16xf32>
    %348 = arith.subf %344, %347 : vector<16x16xf32>
    %349 = math.exp %348 : vector<16x16xf32>
    %cst_98 = arith.constant dense<0.000000e+00> : vector<16xf32>
    %350 = vector.multi_reduction <add>, %349, %cst_98 [0] : vector<16x16xf32> to vector<16xf32>
    %351 = vector.shape_cast %350 : vector<16xf32> to vector<1x16xf32>
    %352 = tpu.reciprocal %351 : vector<1x16xf32> -> vector<1x16xf32>
    %353 = vector.broadcast %352 : vector<1x16xf32> to vector<16x16xf32>
    %354 = arith.mulf %349, %353 : vector<16x16xf32>
    %355 = arith.truncf %354 : vector<16x16xf32> to vector<16x16xbf16>
    %cst_99 = arith.constant dense<0.000000e+00> : vector<16x8xf32>
    %356 = tpu.matmul %355, %320, %cst_99 {dimension_numbers = #tpu.dot_dimension_numbers<[0], [0], [1], [1], [0, 1, 1, 1], [], []>} : vector<16x16xbf16>, vector<16x8xbf16>, vector<16x8xf32> -> vector<16x8xf32>
    %357 = vector.extract_strided_slice %279 {offsets = [0, 16], sizes = [16, 8], strides = [1, 1]} : vector<16x24xf32> to vector<16x8xf32>
    %358 = arith.truncf %357 : vector<16x8xf32> to vector<16x8xbf16>
    %cst_100 = arith.constant dense<0.000000e+00> : vector<16x128xf32>
    %359 = tpu.matmul %358, %8, %cst_100 {dimension_numbers = #tpu.dot_dimension_numbers<[1], [0], [0], [1], [0, 0, 1, 1], [], []>} : vector<16x8xbf16>, vector<8x128xbf16>, vector<16x128xf32> -> vector<16x128xf32>
    %360 = vector.extract_strided_slice %280 {offsets = [16, 0], sizes = [1, 16], strides = [1, 1]} : vector<24x16xf32> to vector<1x16xf32>
    %361 = vector.extract_strided_slice %280 {offsets = [17, 0], sizes = [1, 16], strides = [1, 1]} : vector<24x16xf32> to vector<1x16xf32>
    %362 = vector.extract_strided_slice %280 {offsets = [18, 0], sizes = [1, 16], strides = [1, 1]} : vector<24x16xf32> to vector<1x16xf32>
    %363 = vector.extract_strided_slice %280 {offsets = [19, 0], sizes = [1, 16], strides = [1, 1]} : vector<24x16xf32> to vector<1x16xf32>
    %364 = vector.extract_strided_slice %280 {offsets = [20, 0], sizes = [1, 16], strides = [1, 1]} : vector<24x16xf32> to vector<1x16xf32>
    %365 = vector.extract_strided_slice %280 {offsets = [21, 0], sizes = [1, 16], strides = [1, 1]} : vector<24x16xf32> to vector<1x16xf32>
    %366 = vector.extract_strided_slice %280 {offsets = [22, 0], sizes = [1, 16], strides = [1, 1]} : vector<24x16xf32> to vector<1x16xf32>
    %367 = vector.extract_strided_slice %280 {offsets = [23, 0], sizes = [1, 16], strides = [1, 1]} : vector<24x16xf32> to vector<1x16xf32>
    %368 = tpu.concatenate %360, %361, %362, %363, %364, %365, %366, %367 in 1 : vector<1x16xf32>, vector<1x16xf32>, vector<1x16xf32>, vector<1x16xf32>, vector<1x16xf32>, vector<1x16xf32>, vector<1x16xf32>, vector<1x16xf32> -> vector<1x128xf32>
    %c24 = arith.constant 24 : index
    %c0_101 = arith.constant 0 : index
    %369 = vector.load %arg3[%c24, %c0_101] : memref<28x128xf32, #tpu.memory_space<vmem>>, vector<1x128xf32>
    %370 = arith.addf %368, %369 : vector<1x128xf32>
    %371 = vector.broadcast %370 : vector<1x128xf32> to vector<16x128xf32>
    %372 = arith.addf %359, %371 : vector<16x128xf32>
    %cst_102 = arith.constant 2.000000e-01 : f32
    %373 = vector.broadcast %cst_102 : f32 to vector<16x128xf32>
    %374 = arith.mulf %373, %372 : vector<16x128xf32>
    %375 = arith.maximumf %372, %374 : vector<16x128xf32>
    %c21 = arith.constant 21 : index
    %c0_103 = arith.constant 0 : index
    %376 = vector.load %arg3[%c21, %c0_103] : memref<28x128xf32, #tpu.memory_space<vmem>>, vector<1x128xf32>
    %377 = vector.broadcast %376 : vector<1x128xf32> to vector<16x128xf32>
    %378 = arith.mulf %375, %377 : vector<16x128xf32>
    %379 = arith.truncf %378 : vector<16x128xf32> to vector<16x128xbf16>
    %cst_104 = arith.constant dense<0.000000e+00> : vector<16x16xf32>
    %380 = tpu.matmul %379, %9, %cst_104 {dimension_numbers = #tpu.dot_dimension_numbers<[1], [0], [0], [1], [0, 0, 1, 1], [], []>} : vector<16x128xbf16>, vector<128x16xbf16>, vector<16x16xf32> -> vector<16x16xf32>
    %cst_105 = arith.constant -1.000000e+30 : f32
    %381 = vector.broadcast %cst_105 : f32 to vector<16x16xf32>
    %382 = arith.select %7, %380, %381 : vector<16x16xi1>, vector<16x16xf32>
    %cst_106 = arith.constant dense<0xFF800000> : vector<16xf32>
    %383 = vector.multi_reduction <maximumf>, %382, %cst_106 [0] : vector<16x16xf32> to vector<16xf32>
    %384 = vector.shape_cast %383 : vector<16xf32> to vector<1x16xf32>
    %385 = vector.broadcast %384 : vector<1x16xf32> to vector<16x16xf32>
    %386 = arith.subf %382, %385 : vector<16x16xf32>
    %387 = math.exp %386 : vector<16x16xf32>
    %cst_107 = arith.constant dense<0.000000e+00> : vector<16xf32>
    %388 = vector.multi_reduction <add>, %387, %cst_107 [0] : vector<16x16xf32> to vector<16xf32>
    %389 = vector.shape_cast %388 : vector<16xf32> to vector<1x16xf32>
    %390 = tpu.reciprocal %389 : vector<1x16xf32> -> vector<1x16xf32>
    %391 = vector.broadcast %390 : vector<1x16xf32> to vector<16x16xf32>
    %392 = arith.mulf %387, %391 : vector<16x16xf32>
    %393 = arith.truncf %392 : vector<16x16xf32> to vector<16x16xbf16>
    %cst_108 = arith.constant dense<0.000000e+00> : vector<16x8xf32>
    %394 = tpu.matmul %393, %358, %cst_108 {dimension_numbers = #tpu.dot_dimension_numbers<[0], [0], [1], [1], [0, 1, 1, 1], [], []>} : vector<16x16xbf16>, vector<16x8xbf16>, vector<16x8xf32> -> vector<16x8xf32>
    %395 = tpu.concatenate %318, %356, %394 in 1 : vector<16x8xf32>, vector<16x8xf32>, vector<16x8xf32> -> vector<16x24xf32>
    %c25 = arith.constant 25 : index
    %c0_109 = arith.constant 0 : index
    %396 = vector.load %arg3[%c25, %c0_109] : memref<28x128xf32, #tpu.memory_space<vmem>>, vector<1x24xf32>
    %397 = vector.broadcast %396 : vector<1x24xf32> to vector<16x24xf32>
    %398 = arith.addf %395, %397 : vector<16x24xf32>
    %c176 = arith.constant 176 : index
    %c0_110 = arith.constant 0 : index
    %399 = vector.load %arg2[%c176, %c0_110] : memref<384x128xbf16, #tpu.memory_space<vmem>>, vector<24x32xbf16>
    %c26 = arith.constant 26 : index
    %c0_111 = arith.constant 0 : index
    %400 = vector.load %arg3[%c26, %c0_111] : memref<28x128xf32, #tpu.memory_space<vmem>>, vector<1x32xf32>
    %401 = arith.truncf %398 : vector<16x24xf32> to vector<16x24xbf16>
    %cst_112 = arith.constant dense<0.000000e+00> : vector<16x32xf32>
    %402 = tpu.matmul %401, %399, %cst_112 {dimension_numbers = #tpu.dot_dimension_numbers<[1], [0], [0], [1], [0, 0, 1, 1], [], []>} : vector<16x24xbf16>, vector<24x32xbf16>, vector<16x32xf32> -> vector<16x32xf32>
    %403 = vector.broadcast %400 : vector<1x32xf32> to vector<16x32xf32>
    %404 = arith.addf %402, %403 : vector<16x32xf32>
    %cst_113 = arith.constant 0.000000e+00 : f32
    %405 = vector.broadcast %cst_113 : f32 to vector<16x32xf32>
    %406 = arith.maximumf %404, %405 : vector<16x32xf32>
    %c208 = arith.constant 208 : index
    %c0_114 = arith.constant 0 : index
    %407 = vector.load %arg2[%c208, %c0_114] : memref<384x128xbf16, #tpu.memory_space<vmem>>, vector<32x8xbf16>
    %c27 = arith.constant 27 : index
    %c0_115 = arith.constant 0 : index
    %408 = vector.load %arg3[%c27, %c0_115] : memref<28x128xf32, #tpu.memory_space<vmem>>, vector<1x8xf32>
    %409 = arith.truncf %406 : vector<16x32xf32> to vector<16x32xbf16>
    %cst_116 = arith.constant dense<0.000000e+00> : vector<16x8xf32>
    %410 = tpu.matmul %409, %407, %cst_116 {dimension_numbers = #tpu.dot_dimension_numbers<[1], [0], [0], [1], [0, 0, 1, 1], [], []>} : vector<16x32xbf16>, vector<32x8xbf16>, vector<16x8xf32> -> vector<16x8xf32>
    %411 = vector.broadcast %408 : vector<1x8xf32> to vector<16x8xf32>
    %412 = arith.addf %410, %411 : vector<16x8xf32>
    %c0_117 = arith.constant 0 : index
    %c0_118 = arith.constant 0 : index
    %413 = vector.load %arg4[%c0_117, %c0_118] : memref<16x8xf32, #tpu.memory_space<vmem>>, vector<16x8xf32>
    tpu.vector_store %arg4[%c0_117, %c0_118], %412 {strides = array<i32>} : memref<16x8xf32, #tpu.memory_space<vmem>>, vector<16x8xf32>,
    return
  }
}

</mosaic_0001>

<llo_original>
// kernel: tpu_custom_call.1
$region0: #{tpu_custom_call.1}
  #allocation0 [shape = 'u32[]', space=smem, size = 0x4, offset = 0x4, fixed_abs, tag = 'smem constant byte address 0x4 - core index']
  #allocation1 [shape = 'u32[72,128]{1,0:T(1,128)}', space=vmem, size = 0x9000, scoped, tag = 'internal scratch']
  %s0 = inlined_call_operand.hbm [shape: f32[16,16], index: 0, kind: input, shape index: {}]
  %s1 = inlined_call_operand.hbm [shape: s8[16,16], index: 1, kind: input, shape index: {}]
  %s2 = inlined_call_operand.hbm [shape: bf16[384,128], index: 2, kind: input, shape index: {}]
  %s3 = inlined_call_operand.hbm [shape: f32[28,128], index: 3, kind: input, shape index: {}]
  %s4 = inlined_call_operand.vmem [shape: f32[16,8], index: 4, kind: output, shape index: {}]
  %s5 = sld [smem:[#allocation0]]
  $region42: #{tpu_custom_call.1} parent=0
    _
  %s7 = ssub.s32 1, %s5
  %s8 = scalar_select 0, %s7, %s5
  $region1: #{tpu_custom_call.1} parent=0
    #allocation2 [shape = 'u8[8192]{0}', space=vmem, size = 0x2000, scoped, tag = 'input window, operand 0, single buffered']
    #allocation3 [shape = 's32[1]{0}', space=sflag, size = 0x4, scoped, tag = 'scoped memory for tpu_custom_call.1']
    #allocation4 [shape = 'u8[2048]{0}', space=vmem, size = 0x800, scoped, tag = 'input window, operand 1, single buffered']
    #allocation5 [shape = 's32[1]{0}', space=sflag, size = 0x4, scoped, tag = 'scoped memory for tpu_custom_call.1']
    #allocation6 [shape = 'u8[98304]{0}', space=vmem, size = 0x18000, scoped, tag = 'input window, operand 2, single buffered']
    #allocation7 [shape = 'u8[16384]{0}', space=vmem, size = 0x4000, scoped, tag = 'input window, operand 3, single buffered']
    #allocation8 [shape = 's32[1]{0}', space=sflag, size = 0x4, scoped, tag = 'scoped memory for tpu_custom_call.1']
    %9 = vsyncpa [#allocation3], 0
    %10 = vsyncpa [#allocation5], 0
    %11 = vsyncpa [#allocation8], 0
    // Predicated region
    $region2: #{tpu_custom_call.1} parent=1 // pred_check
      _
    $region3: #{tpu_custom_call.1} parent=1 // pred_check_branch
      %13 = sbr.rel (0) target = $region5
    $region4: #{tpu_custom_call.1} parent=1 // pred_region
      %15 = vsyncadd [#allocation3], 0
      %s16 = sshll.u32 %s0, 4
      %s17 = int_to_ptr.hbm [resolvable:$true] %s16
      %s18 = sshll.u32 [#allocation2], 4
      %s19 = int_to_ptr.vmem [resolvable:$true] %s18
      %24 = dma.hbm_to_vmem [thread:$0]  %s17, 256, %s19, [#allocation3], 128, 128, 8
    $region5: #{tpu_custom_call.1} parent=1 // pred_fallthru
      _
    // Predicated region
    $region6: #{tpu_custom_call.1} parent=1 // pred_check
      _
    $region7: #{tpu_custom_call.1} parent=1 // pred_check_branch
      %26 = sbr.rel (0) target = $region9
    $region8: #{tpu_custom_call.1} parent=1 // pred_region
      %28 = vsyncadd [#allocation5], 0
      %s29 = sshll.u32 %s1, 4
      %s30 = int_to_ptr.hbm [resolvable:$true] %s29
      %s31 = sshll.u32 [#allocation4], 4
      %s32 = int_to_ptr.vmem [resolvable:$true] %s31
      %37 = dma.hbm_to_vmem [thread:$0]  %s30, 64, %s32, [#allocation5], 32, 32, 2
    $region9: #{tpu_custom_call.1} parent=1 // pred_fallthru
      _
    // Predicated region
    $region10: #{tpu_custom_call.1} parent=1 // pred_check
      _
    $region11: #{tpu_custom_call.1} parent=1 // pred_check_branch
      %39 = sbr.rel (0) target = $region13
    $region12: #{tpu_custom_call.1} parent=1 // pred_region
      %41 = vsyncadd [#allocation5], 0
      %s42 = sshll.u32 %s2, 4
      %s43 = int_to_ptr.hbm [resolvable:$true] %s42
      %s44 = sshll.u32 [#allocation6], 4
      %s45 = int_to_ptr.vmem [resolvable:$true] %s44
      %50 = dma.hbm_to_vmem [thread:$0]  %s43, 3072, %s45, [#allocation5], 64, 64, 4
    $region13: #{tpu_custom_call.1} parent=1 // pred_fallthru
      _
    // Predicated region
    $region14: #{tpu_custom_call.1} parent=1 // pred_check
      _
    $region15: #{tpu_custom_call.1} parent=1 // pred_check_branch
      %52 = sbr.rel (0) target = $region17
    $region16: #{tpu_custom_call.1} parent=1 // pred_region
      %54 = vsyncadd [#allocation8], 0
      %s55 = sshll.u32 %s3, 4
      %s56 = int_to_ptr.hbm [resolvable:$true] %s55
      %s57 = sshll.u32 [#allocation7], 4
      %s58 = int_to_ptr.vmem [resolvable:$true] %s57
      %63 = dma.hbm_to_vmem [thread:$0]  %s56, 512, %s58, [#allocation8], 128, 128, 8
    $region17: #{tpu_custom_call.1} parent=1 // pred_fallthru
      _
    // Predicated region
    $region18: #{tpu_custom_call.1} parent=1 // pred_check
      _
    $region19: #{tpu_custom_call.1} parent=1 // pred_check_branch
      %65 = sbr.rel (0) target = $region21
    $region20: #{tpu_custom_call.1} parent=1 // pred_region
      %67 = dma.done [#allocation3], 256
    $region21: #{tpu_custom_call.1} parent=1 // pred_fallthru
      _
    // Predicated region
    $region22: #{tpu_custom_call.1} parent=1 // pred_check
      _
    $region23: #{tpu_custom_call.1} parent=1 // pred_check_branch
      %69 = sbr.rel (0) target = $region25
    $region24: #{tpu_custom_call.1} parent=1 // pred_region
      %71 = dma.done [#allocation5], 64
    $region25: #{tpu_custom_call.1} parent=1 // pred_fallthru
      _
    // Predicated region
    $region26: #{tpu_custom_call.1} parent=1 // pred_check
      _
    $region27: #{tpu_custom_call.1} parent=1 // pred_check_branch
      %73 = sbr.rel (0) target = $region29
    $region28: #{tpu_custom_call.1} parent=1 // pred_region
      %75 = dma.done [#allocation5], 3072
    $region29: #{tpu_custom_call.1} parent=1 // pred_fallthru
      _
    // Predicated region
    $region30: #{tpu_custom_call.1} parent=1 // pred_check
      _
    $region31: #{tpu_custom_call.1} parent=1 // pred_check_branch
      %77 = sbr.rel (0) target = $region33
    $region32: #{tpu_custom_call.1} parent=1 // pred_region
      %79 = dma.done [#allocation8], 512
    $region33: #{tpu_custom_call.1} parent=1 // pred_fallthru
      _
    %v81 = vld [vmem:[#allocation4] sm:$0x3]
    %v82 = vld [vmem:[#allocation4 + $0x2] sm:$0x3]
    %v83 = vunpack.c.0.s8 %v81
    %v84 = vunpack.c.0.s8 %v82
    %v85 = vlaneseq
    %v86 = vshrl.u32 %v85, 7
    %v87 = vadd.s32 %v86, 8
    %v88 = vlaneseq
    %v89 = vand.u32 %v88, 127
    %vm90 = vcmp.eq.s32.totalorder %v86, %v89
    %vm91 = vcmp.eq.s32.totalorder %v87, %v89
    %vm92 = vcmp.ne.s32.totalorder %v83, 0
    %vm93 = vcmp.ne.s32.totalorder %v84, 0
    %vm94 = vmor %vm92, %vm90
    %vm95 = vmor %vm93, %vm91
    %v96 = vld [vmem:[#allocation6 + $0x78] sm:$0xf]
    %v97 = vld [vmem:[#allocation6 + $0x80] sm:$0xf]
    %v98 = vld [vmem:[#allocation6 + $0x84] sm:$0xf]
    %v99 = vld [vmem:[#allocation6 + $0x88] sm:$0xf]
    %v100 = vld [vmem:[#allocation6 + $0x8c] sm:$0xf]
    %v101 = vld [vmem:[#allocation6 + $0x90] sm:$0xf]
    %v102 = vld [vmem:[#allocation6 + $0x94] sm:$0xf]
    %v103 = vld [vmem:[#allocation6 + $0x98] sm:$0xf]
    %v104 = vld [vmem:[#allocation6 + $0x9c] sm:$0xf]
    %v105 = vld [vmem:[#allocation6 + $0xa0] sm:$0xf]
    %v106 = vld [vmem:[#allocation6 + $0xa4] sm:$0xf]
    %v107 = vld [vmem:[#allocation6 + $0xa8] sm:$0xf]
    %v108 = vld [vmem:[#allocation6 + $0xac] sm:$0xf]
    %v109 = vld [vmem:[#allocation6 + $0xb0] sm:$0xf]
    %v110 = vld [vmem:[#allocation6 + $0xb4] sm:$0xf]
    %v111 = vld [vmem:[#allocation6 + $0xb8] sm:$0xf]
    %v112 = vld [vmem:[#allocation6 + $0xbc] sm:$0xf]
    %v113 = vld [vmem:[#allocation2] sm:$0xff]
    %v114 = vld [vmem:[#allocation2 + $0x8] sm:$0xff]
    %v115 = vpack.c.bf16 %v114, %v113
    %v116 = vld [vmem:[#allocation6] sm:$0xf]
    %v117 = vld [vmem:[#allocation6 + $0x4] sm:$0xf]
    %v118 = vld [vmem:[#allocation6 + $0x8] sm:$0xf]
    %v119 = vld [vmem:[#allocation6 + $0xc] sm:$0xf]
    %v120 = vld [vmem:[#allocation6 + $0x10] sm:$0xf]
    %v121 = vld [vmem:[#allocation7] sm:$0x1]
    %v122 = vperm.slane %v121, 0
    %v125 = vunpack.c.l.b16 %v116
    %v126 = vunpack.c.l.b16 %v117
    %v127 = vpack.c.b16 %v126, %v125
    %vm129 = vcmask 130048
    %v131 = vsel %vm129, %v115, 0
    %133 = vmatpush.bf16.msra.mxu0 0
    %134 = vmatpush.bf16.msra.mxu0 0
    %135 = vmatpush.bf16.msra.mxu0 0
    %136 = vmatpush.bf16.msra.mxu0 0
    %137 = vmatpush.bf16.msra.mxu0 0
    %138 = vmatpush.bf16.msra.mxu0 0
    %139 = vmatpush.bf16.msra.mxu0 0
    %140 = vmatpush.bf16.msra.mxu0 %v127
    %141 = vmatmul.bf16.gmra.mxu0 %v131
    %v142 = vpop.f32.mrf.mxu0
    %v143 = vadd.f32 %v122, %v142
    %v144 = vpop.f32.mrf.mxu0
    %v145 = vadd.f32 %v122, %v144
    %146 = vdwg.mxu0
    %v150 = vunpack.c.l.b16 %v118
    %v151 = vunpack.c.l.b16 %v119
    %v152 = vunpack.c.l.b16 %v120
    %v153 = vpack.c.b16 %v151, %v150
    %v154 = vpack.c.b16 %v152, %v152
    %v156 = vsel %vm129, %v153, 0
    %v159 = vsel %vm129, %v154, 0
    %161 = vmatpush.bf16.xpose.msra.mxu0 0
    %162 = vmatpush.bf16.xpose.msra.mxu0 0
    %163 = vmatpush.bf16.xpose.msra.mxu0 0
    %164 = vmatpush.bf16.xpose.msra.mxu0 0
    %165 = vmatpush.bf16.xpose.msra.mxu0 0
    %166 = vmatpush.bf16.xpose.msra.mxu0 0
    %167 = vmatpush.bf16.xpose.msra.mxu0 0
    %168 = vmatpush.bf16.xpose.msra.mxu0 %v131
    %169 = vmatmul.bf16.gmra.mxu0 %v156
    %v170 = vpop.f32.mrf.mxu0
    %v171 = vadd.f32 0.0, %v170
    %v172 = vpop.f32.mrf.mxu0
    %v173 = vadd.f32 0.0, %v172
    %174 = vmatmul.bf16.gmra.mxu0 %v159
    %v175 = vpop.f32.mrf.mxu0
    %v176 = vadd.f32 0.0, %v175
    %v177 = vpop.f32.mrf.mxu0
    %178 = vdwg.mxu0
    %v179 = vpack.c.bf16 %v145, %v143
    %v181 = vrot.slane %v171, 1
    %182 = vrot.lane.b32.xlu0 %v181, 16
    %v183 = vpop.permute.xlu0 %182
    %v185 = vrot.slane %v171, 2
    %186 = vrot.lane.b32.xlu0 %v185, 32
    %v187 = vpop.permute.xlu0 %186
    %v189 = vrot.slane %v171, 3
    %190 = vrot.lane.b32.xlu0 %v189, 48
    %v191 = vpop.permute.xlu0 %190
    %v193 = vrot.slane %v171, 4
    %194 = vrot.lane.b32.xlu0 %v193, 64
    %v195 = vpop.permute.xlu0 %194
    %v197 = vrot.slane %v171, 5
    %198 = vrot.lane.b32.xlu0 %v197, 80
    %v199 = vpop.permute.xlu0 %198
    %v201 = vrot.slane %v171, 6
    %202 = vrot.lane.b32.xlu0 %v201, 96
    %v203 = vpop.permute.xlu0 %202
    %v205 = vrot.slane %v171, 7
    %206 = vrot.lane.b32.xlu0 %v205, 112
    %v207 = vpop.permute.xlu0 %206
    %v209 = vsel %vm129, %v171, %v183
    %vm210 = vcmask 261120
    %v211 = vsel %vm210, %v209, %v187
    %vm212 = vcmask 392192
    %v213 = vsel %vm212, %v211, %v191
    %vm214 = vcmask 523264
    %v215 = vsel %vm214, %v213, %v195
    %vm216 = vcmask 654336
    %v217 = vsel %vm216, %v215, %v199
    %vm218 = vcmask 785408
    %v219 = vsel %vm218, %v217, %v203
    %vm220 = vcmask 916480
    %v221 = vsel %vm220, %v219, %v207
    %v222 = vld [vmem:[#allocation7 + $0x4] sm:$0x1]
    %v223 = vadd.f32 %v221, %v222
    %v224 = vperm.slane %v223, 0
    %vm225 = vcmask 64512
    %v227 = vsel %vm225, %v179, 0
    %vm229 = vcmask 1043456
    %v231 = vsel %vm229, %v96, 0
    %233 = vmatpush.bf16.msra.mxu0 0
    %234 = vmatpush.bf16.msra.mxu0 0
    %235 = vmatpush.bf16.msra.mxu0 0
    %236 = vmatpush.bf16.msra.mxu0 0
    %237 = vmatpush.bf16.msra.mxu0 0
    %238 = vmatpush.bf16.msra.mxu0 0
    %239 = vmatpush.bf16.msra.mxu0 0
    %240 = vmatpush.bf16.msra.mxu0 %v231
    %241 = vmatmul.bf16.gmra.mxu0 %v227
    %v242 = vpop.f32.mrf.mxu0
    %v243 = vadd.f32 %v224, %v242
    %v244 = vpop.f32.mrf.mxu0
    %v245 = vadd.f32 %v224, %v244
    %246 = vdwg.mxu0
    %v247 = vmul.f32 %v243, 0.2
    %v248 = vmul.f32 %v245, 0.2
    %v249 = vmax.f32 %v243, %v247
    %v250 = vmax.f32 %v245, %v248
    %v251 = vld [vmem:[#allocation7 + $0x1] sm:$0x1]
    %v252 = vperm.slane %v251, 0
    %v253 = vmul.f32 %v249, %v252
    %v254 = vmul.f32 %v250, %v252
    %v255 = vpack.c.bf16 %v254, %v253
    %v272 = vunpack.c.l.b16 %v97
    %v273 = vunpack.c.l.b16 %v98
    %v274 = vunpack.c.l.b16 %v99
    %v275 = vunpack.c.l.b16 %v100
    %v276 = vunpack.c.l.b16 %v101
    %v277 = vunpack.c.l.b16 %v102
    %v278 = vunpack.c.l.b16 %v103
    %v279 = vunpack.c.l.b16 %v104
    %v280 = vunpack.c.l.b16 %v105
    %v281 = vunpack.c.l.b16 %v106
    %v282 = vunpack.c.l.b16 %v107
    %v283 = vunpack.c.l.b16 %v108
    %v284 = vunpack.c.l.b16 %v109
    %v285 = vunpack.c.l.b16 %v110
    %v286 = vunpack.c.l.b16 %v111
    %v287 = vunpack.c.l.b16 %v112
    %v288 = vpack.c.b16 %v273, %v272
    %v289 = vpack.c.b16 %v275, %v274
    %v290 = vpack.c.b16 %v277, %v276
    %v291 = vpack.c.b16 %v279, %v278
    %v292 = vpack.c.b16 %v281, %v280
    %v293 = vpack.c.b16 %v283, %v282
    %v294 = vpack.c.b16 %v285, %v284
    %v295 = vpack.c.b16 %v287, %v286
    %304 = vmatpush.bf16.msra.mxu0 %v295
    %305 = vmatpush.bf16.msra.mxu0 %v294
    %306 = vmatpush.bf16.msra.mxu0 %v293
    %307 = vmatpush.bf16.msra.mxu0 %v292
    %308 = vmatpush.bf16.msra.mxu0 %v291
    %309 = vmatpush.bf16.msra.mxu0 %v290
    %310 = vmatpush.bf16.msra.mxu0 %v289
    %311 = vmatpush.bf16.msra.mxu0 %v288
    %312 = vmatmul.bf16.gmra.mxu0 %v255
    %v313 = vpop.f32.mrf.mxu0
    %v314 = vadd.f32 0.0, %v313
    %v315 = vpop.f32.mrf.mxu0
    %v316 = vadd.f32 0.0, %v315
    %317 = vdwg.mxu0
    %v318 = vsel %vm94, %v314, -1e+30
    %v319 = vsel %vm95, %v316, -1e+30
    %v320 = vsel %vm129, %v318, -inf
    %v321 = vsel %vm129, %v319, -inf
    %v322 = vmax.f32 %v320, %v321
    %v323 = vrot.slane %v322, 4
    %v324 = vmax.f32 %v322, %v323
    %v325 = vrot.slane %v324, 2
    %v326 = vmax.f32 %v324, %v325
    %v327 = vrot.slane %v326, 1
    %v328 = vmax.f32 %v326, %v327
    %v329 = vsub.f32 %v318, %v328
    %v330 = vsub.f32 %v319, %v328
    %v331 = vmul.f32 %v329, 1.442695
    %v332 = vpow.pop %v331
    %v333 = vmul.f32 %v330, 1.442695
    %v334 = vpow.pop %v333
    %v335 = vsel %vm129, %v332, 0.0
    %v336 = vsel %vm129, %v334, 0.0
    %v337 = vadd.f32 %v335, %v336
    %v338 = vrot.slane %v337, 4
    %v339 = vadd.f32 %v337, %v338
    %v340 = vrot.slane %v339, 2
    %v341 = vadd.f32 %v339, %v340
    %v342 = vrot.slane %v341, 1
    %v343 = vadd.f32 %v341, %v342
    %v344 = vrcp.pop %v343
    %v345 = vmul.f32 %v343, %v344
    %v346 = vsub.f32 1.0, %v345
    %v347 = vmul.f32 %v344, %v346
    %v348 = vadd.f32 %v344, %v347
    %vm349 = vweird.f32 %v343
    %vm350 = vweird.f32 %v344
    %vm351 = vmor %vm349, %vm350
    %v352 = vsel %vm351, %v344, %v348
    %v353 = vand.u32 2147483647, %v343
    %vm354 = vcmp.eq.f32.partialorder %v353, 8.507059e+37
    %v355 = vand.u32 %v343, 2147483648
    %v356 = vor.u32 1.1754944e-38, %v355
    %v357 = vsel %vm354, %v356, %v352
    %v358 = vmul.f32 %v332, %v357
    %v359 = vmul.f32 %v334, %v357
    %v360 = vpack.c.bf16 %v359, %v358
    %361 = vxpose.xlu0.c.b16.start [1/8] %v360, 128
    %362 = vxpose.xlu0.c.b16.cont [2/8] 0, 128
    %363 = vxpose.xlu0.c.b16.cont [3/8] 0, 128
    %364 = vxpose.xlu0.c.b16.cont [4/8] 0, 128
    %365 = vxpose.xlu0.c.b16.cont [5/8] 0, 128
    %366 = vxpose.xlu0.c.b16.cont [6/8] 0, 128
    %367 = vxpose.xlu0.c.b16.cont [7/8] 0, 128
    %368 = vxpose.xlu0.c.b16.end [8/8] 0, 128
    %v369 = vpop.trf.xlu0
    %v370 = vpop.trf.xlu0
    %v371 = vpop.trf.xlu0
    %v372 = vpop.trf.xlu0
    %v373 = vpop.trf.xlu0
    %v374 = vpop.trf.xlu0
    %v375 = vpop.trf.xlu0
    %v376 = vpop.trf.xlu0
    %v378 = vsel %vm129, %v369, 0
    %380 = vmatpush.bf16.msra.mxu0 0
    %381 = vmatpush.bf16.msra.mxu0 0
    %382 = vmatpush.bf16.msra.mxu0 0
    %383 = vmatpush.bf16.msra.mxu0 0
    %384 = vmatpush.bf16.msra.mxu0 0
    %385 = vmatpush.bf16.msra.mxu0 0
    %386 = vmatpush.bf16.msra.mxu0 0
    %387 = vmatpush.bf16.msra.mxu0 %v179
    %388 = vmatmul.bf16.gmra.mxu0 %v378
    %v389 = vpop.f32.mrf.mxu0
    %v390 = vadd.f32 0.0, %v389
    %v391 = vpop.f32.mrf.mxu0
    %v392 = vadd.f32 0.0, %v391
    %393 = vdwg.mxu0
    %v395 = vrot.slane %v173, 1
    %396 = vrot.lane.b32.xlu0 %v395, 16
    %v397 = vpop.permute.xlu0 %396
    %v399 = vrot.slane %v173, 2
    %400 = vrot.lane.b32.xlu0 %v399, 32
    %v401 = vpop.permute.xlu0 %400
    %v403 = vrot.slane %v173, 3
    %404 = vrot.lane.b32.xlu0 %v403, 48
    %v405 = vpop.permute.xlu0 %404
    %v407 = vrot.slane %v173, 4
    %408 = vrot.lane.b32.xlu0 %v407, 64
    %v409 = vpop.permute.xlu0 %408
    %v411 = vrot.slane %v173, 5
    %412 = vrot.lane.b32.xlu0 %v411, 80
    %v413 = vpop.permute.xlu0 %412
    %v415 = vrot.slane %v173, 6
    %416 = vrot.lane.b32.xlu0 %v415, 96
    %v417 = vpop.permute.xlu0 %416
    %v419 = vrot.slane %v173, 7
    %420 = vrot.lane.b32.xlu0 %v419, 112
    %v421 = vpop.permute.xlu0 %420
    %v423 = vsel %vm129, %v173, %v397
    %v424 = vsel %vm210, %v423, %v401
    %v425 = vsel %vm212, %v424, %v405
    %v426 = vsel %vm214, %v425, %v409
    %v427 = vsel %vm216, %v426, %v413
    %v428 = vsel %vm218, %v427, %v417
    %v429 = vsel %vm220, %v428, %v421
    %v430 = vld [vmem:[#allocation7 + $0x5] sm:$0x1]
    %v431 = vadd.f32 %v429, %v430
    %v432 = vperm.slane %v431, 0
    %434 = vrot.lane.b32.xlu0 %v179, 120
    %v435 = vpop.permute.xlu0 %434
    %v437 = vsel %vm225, %v435, 0
    %439 = vmatpush.bf16.msra.mxu0 0
    %440 = vmatpush.bf16.msra.mxu0 0
    %441 = vmatpush.bf16.msra.mxu0 0
    %442 = vmatpush.bf16.msra.mxu0 0
    %443 = vmatpush.bf16.msra.mxu0 0
    %444 = vmatpush.bf16.msra.mxu0 0
    %445 = vmatpush.bf16.msra.mxu0 0
    %446 = vmatpush.bf16.msra.mxu0 %v231
    %447 = vmatmul.bf16.gmra.mxu0 %v437
    %v448 = vpop.f32.mrf.mxu0
    %v449 = vadd.f32 %v432, %v448
    %v450 = vpop.f32.mrf.mxu0
    %v451 = vadd.f32 %v432, %v450
    %452 = vdwg.mxu0
    %v453 = vmul.f32 %v449, 0.2
    %v454 = vmul.f32 %v451, 0.2
    %v455 = vmax.f32 %v449, %v453
    %v456 = vmax.f32 %v451, %v454
    %v457 = vld [vmem:[#allocation7 + $0x2] sm:$0x1]
    %v458 = vperm.slane %v457, 0
    %v459 = vmul.f32 %v455, %v458
    %v460 = vmul.f32 %v456, %v458
    %v461 = vpack.c.bf16 %v460, %v459
    %462 = vmatpush.bf16.msra.mxu0 %v295
    %463 = vmatpush.bf16.msra.mxu0 %v294
    %464 = vmatpush.bf16.msra.mxu0 %v293
    %465 = vmatpush.bf16.msra.mxu0 %v292
    %466 = vmatpush.bf16.msra.mxu0 %v291
    %467 = vmatpush.bf16.msra.mxu0 %v290
    %468 = vmatpush.bf16.msra.mxu0 %v289
    %469 = vmatpush.bf16.msra.mxu0 %v288
    %470 = vmatmul.bf16.gmra.mxu0 %v461
    %v471 = vpop.f32.mrf.mxu0
    %v472 = vadd.f32 0.0, %v471
    %v473 = vpop.f32.mrf.mxu0
    %v474 = vadd.f32 0.0, %v473
    %475 = vdwg.mxu0
    %v476 = vsel %vm94, %v472, -1e+30
    %v477 = vsel %vm95, %v474, -1e+30
    %v478 = vsel %vm129, %v476, -inf
    %v479 = vsel %vm129, %v477, -inf
    %v480 = vmax.f32 %v478, %v479
    %v481 = vrot.slane %v480, 4
    %v482 = vmax.f32 %v480, %v481
    %v483 = vrot.slane %v482, 2
    %v484 = vmax.f32 %v482, %v483
    %v485 = vrot.slane %v484, 1
    %v486 = vmax.f32 %v484, %v485
    %v487 = vsub.f32 %v476, %v486
    %v488 = vsub.f32 %v477, %v486
    %v489 = vmul.f32 %v487, 1.442695
    %v490 = vpow.pop %v489
    %v491 = vmul.f32 %v488, 1.442695
    %v492 = vpow.pop %v491
    %v493 = vsel %vm129, %v490, 0.0
    %v494 = vsel %vm129, %v492, 0.0
    %v495 = vadd.f32 %v493, %v494
    %v496 = vrot.slane %v495, 4
    %v497 = vadd.f32 %v495, %v496
    %v498 = vrot.slane %v497, 2
    %v499 = vadd.f32 %v497, %v498
    %v500 = vrot.slane %v499, 1
    %v501 = vadd.f32 %v499, %v500
    %v502 = vrcp.pop %v501
    %v503 = vmul.f32 %v501, %v502
    %v504 = vsub.f32 1.0, %v503
    %v505 = vmul.f32 %v502, %v504
    %v506 = vadd.f32 %v502, %v505
    %vm507 = vweird.f32 %v501
    %vm508 = vweird.f32 %v502
    %vm509 = vmor %vm507, %vm508
    %v510 = vsel %vm509, %v502, %v506
    %v511 = vand.u32 2147483647, %v501
    %vm512 = vcmp.eq.f32.partialorder %v511, 8.507059e+37
    %v513 = vand.u32 %v501, 2147483648
    %v514 = vor.u32 1.1754944e-38, %v513
    %v515 = vsel %vm512, %v514, %v510
    %v516 = vmul.f32 %v490, %v515
    %v517 = vmul.f32 %v492, %v515
    %v518 = vpack.c.bf16 %v517, %v516
    %519 = vxpose.xlu0.c.b16.start [1/8] %v518, 128
    %520 = vxpose.xlu0.c.b16.cont [2/8] 0, 128
    %521 = vxpose.xlu0.c.b16.cont [3/8] 0, 128
    %522 = vxpose.xlu0.c.b16.cont [4/8] 0, 128
    %523 = vxpose.xlu0.c.b16.cont [5/8] 0, 128
    %524 = vxpose.xlu0.c.b16.cont [6/8] 0, 128
    %525 = vxpose.xlu0.c.b16.cont [7/8] 0, 128
    %526 = vxpose.xlu0.c.b16.end [8/8] 0, 128
    %v527 = vpop.trf.xlu0
    %v528 = vpop.trf.xlu0
    %v529 = vpop.trf.xlu0
    %v530 = vpop.trf.xlu0
    %v531 = vpop.trf.xlu0
    %v532 = vpop.trf.xlu0
    %v533 = vpop.trf.xlu0
    %v534 = vpop.trf.xlu0
    %v537 = vsel %vm129, %v527, 0
    %539 = vmatpush.bf16.msra.mxu0 0
    %540 = vmatpush.bf16.msra.mxu0 0
    %541 = vmatpush.bf16.msra.mxu0 0
    %542 = vmatpush.bf16.msra.mxu0 0
    %543 = vmatpush.bf16.msra.mxu0 0
    %544 = vmatpush.bf16.msra.mxu0 0
    %545 = vmatpush.bf16.msra.mxu0 0
    %546 = vmatpush.bf16.msra.mxu0 %v435
    %547 = vmatmul.bf16.gmra.mxu0 %v537
    %v548 = vpop.f32.mrf.mxu0
    %v549 = vadd.f32 0.0, %v548
    %v550 = vpop.f32.mrf.mxu0
    %v551 = vadd.f32 0.0, %v550
    %552 = vdwg.mxu0
    %v554 = vrot.slane %v176, 1
    %555 = vrot.lane.b32.xlu0 %v554, 16
    %v556 = vpop.permute.xlu0 %555
    %v558 = vrot.slane %v176, 2
    %559 = vrot.lane.b32.xlu0 %v558, 32
    %v560 = vpop.permute.xlu0 %559
    %v562 = vrot.slane %v176, 3
    %563 = vrot.lane.b32.xlu0 %v562, 48
    %v564 = vpop.permute.xlu0 %563
    %v566 = vrot.slane %v176, 4
    %567 = vrot.lane.b32.xlu0 %v566, 64
    %v568 = vpop.permute.xlu0 %567
    %v570 = vrot.slane %v176, 5
    %571 = vrot.lane.b32.xlu0 %v570, 80
    %v572 = vpop.permute.xlu0 %571
    %v574 = vrot.slane %v176, 6
    %575 = vrot.lane.b32.xlu0 %v574, 96
    %v576 = vpop.permute.xlu0 %575
    %v578 = vrot.slane %v176, 7
    %579 = vrot.lane.b32.xlu0 %v578, 112
    %v580 = vpop.permute.xlu0 %579
    %v582 = vsel %vm129, %v176, %v556
    %v583 = vsel %vm210, %v582, %v560
    %v584 = vsel %vm212, %v583, %v564
    %v585 = vsel %vm214, %v584, %v568
    %v586 = vsel %vm216, %v585, %v572
    %v587 = vsel %vm218, %v586, %v576
    %v588 = vsel %vm220, %v587, %v580
    %v589 = vld [vmem:[#allocation7 + $0x6] sm:$0x1]
    %v590 = vadd.f32 %v588, %v589
    %v591 = vperm.slane %v590, 0
    %592 = vrot.lane.b32.xlu0 %v179, 112
    %v593 = vpop.permute.xlu0 %592
    %v595 = vsel %vm225, %v593, 0
    %597 = vmatpush.bf16.msra.mxu0 0
    %598 = vmatpush.bf16.msra.mxu0 0
    %599 = vmatpush.bf16.msra.mxu0 0
    %600 = vmatpush.bf16.msra.mxu0 0
    %601 = vmatpush.bf16.msra.mxu0 0
    %602 = vmatpush.bf16.msra.mxu0 0
    %603 = vmatpush.bf16.msra.mxu0 0
    %604 = vmatpush.bf16.msra.mxu0 %v231
    %605 = vmatmul.bf16.gmra.mxu0 %v595
    %v606 = vpop.f32.mrf.mxu0
    %v607 = vadd.f32 %v591, %v606
    %v608 = vpop.f32.mrf.mxu0
    %v609 = vadd.f32 %v591, %v608
    %610 = vdwg.mxu0
    %v611 = vmul.f32 %v607, 0.2
    %v612 = vmul.f32 %v609, 0.2
    %v613 = vmax.f32 %v607, %v611
    %v614 = vmax.f32 %v609, %v612
    %v615 = vld [vmem:[#allocation7 + $0x3] sm:$0x1]
    %v616 = vperm.slane %v615, 0
    %v617 = vmul.f32 %v613, %v616
    %v618 = vmul.f32 %v614, %v616
    %v619 = vpack.c.bf16 %v618, %v617
    %620 = vmatpush.bf16.msra.mxu0 %v295
    %621 = vmatpush.bf16.msra.mxu0 %v294
    %622 = vmatpush.bf16.msra.mxu0 %v293
    %623 = vmatpush.bf16.msra.mxu0 %v292
    %624 = vmatpush.bf16.msra.mxu0 %v291
    %625 = vmatpush.bf16.msra.mxu0 %v290
    %626 = vmatpush.bf16.msra.mxu0 %v289
    %627 = vmatpush.bf16.msra.mxu0 %v288
    %628 = vmatmul.bf16.gmra.mxu0 %v619
    %v629 = vpop.f32.mrf.mxu0
    %v630 = vadd.f32 0.0, %v629
    %v631 = vpop.f32.mrf.mxu0
    %v632 = vadd.f32 0.0, %v631
    %633 = vdwg.mxu0
    %v634 = vsel %vm94, %v630, -1e+30
    %v635 = vsel %vm95, %v632, -1e+30
    %v636 = vsel %vm129, %v634, -inf
    %v637 = vsel %vm129, %v635, -inf
    %v638 = vmax.f32 %v636, %v637
    %v639 = vrot.slane %v638, 4
    %v640 = vmax.f32 %v638, %v639
    %v641 = vrot.slane %v640, 2
    %v642 = vmax.f32 %v640, %v641
    %v643 = vrot.slane %v642, 1
    %v644 = vmax.f32 %v642, %v643
    %v645 = vsub.f32 %v634, %v644
    %v646 = vsub.f32 %v635, %v644
    %v647 = vmul.f32 %v645, 1.442695
    %v648 = vpow.pop %v647
    %v649 = vmul.f32 %v646, 1.442695
    %v650 = vpow.pop %v649
    %v651 = vsel %vm129, %v648, 0.0
    %v652 = vsel %vm129, %v650, 0.0
    %v653 = vadd.f32 %v651, %v652
    %v654 = vrot.slane %v653, 4
    %v655 = vadd.f32 %v653, %v654
    %v656 = vrot.slane %v655, 2
    %v657 = vadd.f32 %v655, %v656
    %v658 = vrot.slane %v657, 1
    %v659 = vadd.f32 %v657, %v658
    %v660 = vrcp.pop %v659
    %v661 = vmul.f32 %v659, %v660
    %v662 = vsub.f32 1.0, %v661
    %v663 = vmul.f32 %v660, %v662
    %v664 = vadd.f32 %v660, %v663
    %vm665 = vweird.f32 %v659
    %vm666 = vweird.f32 %v660
    %vm667 = vmor %vm665, %vm666
    %v668 = vsel %vm667, %v660, %v664
    %v669 = vand.u32 2147483647, %v659
    %vm670 = vcmp.eq.f32.partialorder %v669, 8.507059e+37
    %v671 = vand.u32 %v659, 2147483648
    %v672 = vor.u32 1.1754944e-38, %v671
    %v673 = vsel %vm670, %v672, %v668
    %v674 = vmul.f32 %v648, %v673
    %v675 = vmul.f32 %v650, %v673
    %v676 = vpack.c.bf16 %v675, %v674
    %677 = vxpose.xlu0.c.b16.start [1/8] %v676, 128
    %678 = vxpose.xlu0.c.b16.cont [2/8] 0, 128
    %679 = vxpose.xlu0.c.b16.cont [3/8] 0, 128
    %680 = vxpose.xlu0.c.b16.cont [4/8] 0, 128
    %681 = vxpose.xlu0.c.b16.cont [5/8] 0, 128
    %682 = vxpose.xlu0.c.b16.cont [6/8] 0, 128
    %683 = vxpose.xlu0.c.b16.cont [7/8] 0, 128
    %684 = vxpose.xlu0.c.b16.end [8/8] 0, 128
    %v685 = vpop.trf.xlu0
    %v686 = vpop.trf.xlu0
    %v687 = vpop.trf.xlu0
    %v688 = vpop.trf.xlu0
    %v689 = vpop.trf.xlu0
    %v690 = vpop.trf.xlu0
    %v691 = vpop.trf.xlu0
    %v692 = vpop.trf.xlu0
    %v695 = vsel %vm129, %v685, 0
    %697 = vmatpush.bf16.msra.mxu0 0
    %698 = vmatpush.bf16.msra.mxu0 0
    %699 = vmatpush.bf16.msra.mxu0 0
    %700 = vmatpush.bf16.msra.mxu0 0
    %701 = vmatpush.bf16.msra.mxu0 0
    %702 = vmatpush.bf16.msra.mxu0 0
    %703 = vmatpush.bf16.msra.mxu0 0
    %704 = vmatpush.bf16.msra.mxu0 %v593
    %705 = vmatmul.bf16.gmra.mxu0 %v695
    %v706 = vpop.f32.mrf.mxu0
    %v707 = vadd.f32 0.0, %v706
    %v708 = vpop.f32.mrf.mxu0
    %v709 = vadd.f32 0.0, %v708
    %710 = vdwg.mxu0
    %713 = vrot.lane.b32.xlu0 %v549, 8
    %v714 = vpop.permute.xlu0 %713
    %715 = vrot.lane.b32.xlu0 %v551, 8
    %v716 = vpop.permute.xlu0 %715
    %721 = vrot.lane.b32.xlu0 %v707, 16
    %v722 = vpop.permute.xlu0 %721
    %723 = vrot.lane.b32.xlu0 %v709, 16
    %v724 = vpop.permute.xlu0 %723
    %v727 = vsel %vm225, %v390, %v714
    %v728 = vsel %vm225, %v392, %v716
    %v729 = vsel %vm129, %v727, %v722
    %v730 = vsel %vm129, %v728, %v724
    %v731 = vld [vmem:[#allocation7 + $0x7] sm:$0x1]
    %v732 = vld [vmem:[#allocation7 + $0x8] sm:$0x1]
    %v733 = vperm.slane %v731, 0
    %v734 = vmul.f32 %v729, %v733
    %v735 = vmul.f32 %v730, %v733
    %v736 = vperm.slane %v732, 0
    %v737 = vadd.f32 %v734, %v736
    %v738 = vadd.f32 %v735, %v736
    %v739 = vmax.f32 %v737, 0.0
    %v740 = vmax.f32 %v738, 0.0
    %v741 = vpack.c.bf16 %v740, %v739
    %v742 = vld [vmem:[#allocation6 + $0x18] sm:$0xf]
    %v743 = vld [vmem:[#allocation6 + $0x1c] sm:$0xf]
    %v744 = vld [vmem:[#allocation6 + $0x20] sm:$0xf]
    %v745 = vld [vmem:[#allocation6 + $0x28] sm:$0xf]
    %v746 = vld [vmem:[#allocation6 + $0x2c] sm:$0xf]
    %v747 = vld [vmem:[#allocation6 + $0x30] sm:$0xf]
    %v748 = vld [vmem:[#allocation7 + $0x9] sm:$0x1]
    %v749 = vperm.slane %v748, 0
    %v753 = vunpack.c.l.b16 %v742
    %v754 = vunpack.c.l.b16 %v743
    %v755 = vunpack.c.l.b16 %v744
    %v756 = vpack.c.b16 %v754, %v753
    %v757 = vpack.c.b16 %v755, %v755
    %vm759 = vcmask 195584
    %v761 = vsel %vm759, %v741, 0
    %v764 = vsel %vm229, %v757, 0
    %766 = vmatpush.bf16.msra.mxu0 0
    %767 = vmatpush.bf16.msra.mxu0 0
    %768 = vmatpush.bf16.msra.mxu0 0
    %769 = vmatpush.bf16.msra.mxu0 0
    %770 = vmatpush.bf16.msra.mxu0 0
    %771 = vmatpush.bf16.msra.mxu0 0
    %772 = vmatpush.bf16.msra.mxu0 %v764
    %773 = vmatpush.bf16.msra.mxu0 %v756
    %774 = vmatmul.bf16.gmra.mxu0 %v761
    %v775 = vpop.f32.mrf.mxu0
    %v776 = vadd.f32 %v749, %v775
    %v777 = vpop.f32.mrf.mxu0
    %v778 = vadd.f32 %v749, %v777
    %779 = vdwg.mxu0
    %v783 = vunpack.c.l.b16 %v745
    %v784 = vunpack.c.l.b16 %v746
    %v785 = vunpack.c.l.b16 %v747
    %v786 = vpack.c.b16 %v784, %v783
    %v787 = vpack.c.b16 %v785, %v785
    %v789 = vsel %vm759, %v786, 0
    %v792 = vsel %vm759, %v787, 0
    %794 = vmatpush.bf16.xpose.msra.mxu0 0
    %795 = vmatpush.bf16.xpose.msra.mxu0 0
    %796 = vmatpush.bf16.xpose.msra.mxu0 0
    %797 = vmatpush.bf16.xpose.msra.mxu0 0
    %798 = vmatpush.bf16.xpose.msra.mxu0 0
    %799 = vmatpush.bf16.xpose.msra.mxu0 0
    %800 = vmatpush.bf16.xpose.msra.mxu0 0
    %801 = vmatpush.bf16.xpose.msra.mxu0 %v761
    %802 = vmatmul.bf16.gmra.mxu0 %v789
    %v803 = vpop.f32.mrf.mxu0
    %v804 = vadd.f32 0.0, %v803
    %v805 = vpop.f32.mrf.mxu0
    %v806 = vadd.f32 0.0, %v805
    %807 = vmatmul.bf16.gmra.mxu0 %v792
    %v808 = vpop.f32.mrf.mxu0
    %v809 = vadd.f32 0.0, %v808
    %v810 = vpop.f32.mrf.mxu0
    %811 = vdwg.mxu0
    %v812 = vpack.c.bf16 %v778, %v776
    %v814 = vrot.slane %v804, 1
    %815 = vrot.lane.b32.xlu0 %v814, 16
    %v816 = vpop.permute.xlu0 %815
    %v818 = vrot.slane %v804, 2
    %819 = vrot.lane.b32.xlu0 %v818, 32
    %v820 = vpop.permute.xlu0 %819
    %v822 = vrot.slane %v804, 3
    %823 = vrot.lane.b32.xlu0 %v822, 48
    %v824 = vpop.permute.xlu0 %823
    %v826 = vrot.slane %v804, 4
    %827 = vrot.lane.b32.xlu0 %v826, 64
    %v828 = vpop.permute.xlu0 %827
    %v830 = vrot.slane %v804, 5
    %831 = vrot.lane.b32.xlu0 %v830, 80
    %v832 = vpop.permute.xlu0 %831
    %v834 = vrot.slane %v804, 6
    %835 = vrot.lane.b32.xlu0 %v834, 96
    %v836 = vpop.permute.xlu0 %835
    %v838 = vrot.slane %v804, 7
    %839 = vrot.lane.b32.xlu0 %v838, 112
    %v840 = vpop.permute.xlu0 %839
    %v842 = vsel %vm129, %v804, %v816
    %v843 = vsel %vm210, %v842, %v820
    %v844 = vsel %vm212, %v843, %v824
    %v845 = vsel %vm214, %v844, %v828
    %v846 = vsel %vm216, %v845, %v832
    %v847 = vsel %vm218, %v846, %v836
    %v848 = vsel %vm220, %v847, %v840
    %v849 = vld [vmem:[#allocation7 + $0xd] sm:$0x1]
    %v850 = vadd.f32 %v848, %v849
    %v851 = vperm.slane %v850, 0
    %v853 = vsel %vm225, %v812, 0
    %855 = vmatpush.bf16.msra.mxu0 0
    %856 = vmatpush.bf16.msra.mxu0 0
    %857 = vmatpush.bf16.msra.mxu0 0
    %858 = vmatpush.bf16.msra.mxu0 0
    %859 = vmatpush.bf16.msra.mxu0 0
    %860 = vmatpush.bf16.msra.mxu0 0
    %861 = vmatpush.bf16.msra.mxu0 0
    %862 = vmatpush.bf16.msra.mxu0 %v231
    %863 = vmatmul.bf16.gmra.mxu0 %v853
    %v864 = vpop.f32.mrf.mxu0
    %v865 = vadd.f32 %v851, %v864
    %v866 = vpop.f32.mrf.mxu0
    %v867 = vadd.f32 %v851, %v866
    %868 = vdwg.mxu0
    %v869 = vmul.f32 %v865, 0.2
    %v870 = vmul.f32 %v867, 0.2
    %v871 = vmax.f32 %v865, %v869
    %v872 = vmax.f32 %v867, %v870
    %v873 = vld [vmem:[#allocation7 + $0xa] sm:$0x1]
    %v874 = vperm.slane %v873, 0
    %v875 = vmul.f32 %v871, %v874
    %v876 = vmul.f32 %v872, %v874
    %v877 = vpack.c.bf16 %v876, %v875
    %878 = vmatpush.bf16.msra.mxu0 %v295
    %879 = vmatpush.bf16.msra.mxu0 %v294
    %880 = vmatpush.bf16.msra.mxu0 %v293
    %881 = vmatpush.bf16.msra.mxu0 %v292
    %882 = vmatpush.bf16.msra.mxu0 %v291
    %883 = vmatpush.bf16.msra.mxu0 %v290
    %884 = vmatpush.bf16.msra.mxu0 %v289
    %885 = vmatpush.bf16.msra.mxu0 %v288
    %886 = vmatmul.bf16.gmra.mxu0 %v877
    %v887 = vpop.f32.mrf.mxu0
    %v888 = vadd.f32 0.0, %v887
    %v889 = vpop.f32.mrf.mxu0
    %v890 = vadd.f32 0.0, %v889
    %891 = vdwg.mxu0
    %v892 = vsel %vm94, %v888, -1e+30
    %v893 = vsel %vm95, %v890, -1e+30
    %v894 = vsel %vm129, %v892, -inf
    %v895 = vsel %vm129, %v893, -inf
    %v896 = vmax.f32 %v894, %v895
    %v897 = vrot.slane %v896, 4
    %v898 = vmax.f32 %v896, %v897
    %v899 = vrot.slane %v898, 2
    %v900 = vmax.f32 %v898, %v899
    %v901 = vrot.slane %v900, 1
    %v902 = vmax.f32 %v900, %v901
    %v903 = vsub.f32 %v892, %v902
    %v904 = vsub.f32 %v893, %v902
    %v905 = vmul.f32 %v903, 1.442695
    %v906 = vpow.pop %v905
    %v907 = vmul.f32 %v904, 1.442695
    %v908 = vpow.pop %v907
    %v909 = vsel %vm129, %v906, 0.0
    %v910 = vsel %vm129, %v908, 0.0
    %v911 = vadd.f32 %v909, %v910
    %v912 = vrot.slane %v911, 4
    %v913 = vadd.f32 %v911, %v912
    %v914 = vrot.slane %v913, 2
    %v915 = vadd.f32 %v913, %v914
    %v916 = vrot.slane %v915, 1
    %v917 = vadd.f32 %v915, %v916
    %v918 = vrcp.pop %v917
    %v919 = vmul.f32 %v917, %v918
    %v920 = vsub.f32 1.0, %v919
    %v921 = vmul.f32 %v918, %v920
    %v922 = vadd.f32 %v918, %v921
    %vm923 = vweird.f32 %v917
    %vm924 = vweird.f32 %v918
    %vm925 = vmor %vm923, %vm924
    %v926 = vsel %vm925, %v918, %v922
    %v927 = vand.u32 2147483647, %v917
    %vm928 = vcmp.eq.f32.partialorder %v927, 8.507059e+37
    %v929 = vand.u32 %v917, 2147483648
    %v930 = vor.u32 1.1754944e-38, %v929
    %v931 = vsel %vm928, %v930, %v926
    %v932 = vmul.f32 %v906, %v931
    %v933 = vmul.f32 %v908, %v931
    %v934 = vpack.c.bf16 %v933, %v932
    %935 = vxpose.xlu0.c.b16.start [1/8] %v934, 128
    %936 = vxpose.xlu0.c.b16.cont [2/8] 0, 128
    %937 = vxpose.xlu0.c.b16.cont [3/8] 0, 128
    %938 = vxpose.xlu0.c.b16.cont [4/8] 0, 128
    %939 = vxpose.xlu0.c.b16.cont [5/8] 0, 128
    %940 = vxpose.xlu0.c.b16.cont [6/8] 0, 128
    %941 = vxpose.xlu0.c.b16.cont [7/8] 0, 128
    %942 = vxpose.xlu0.c.b16.end [8/8] 0, 128
    %v943 = vpop.trf.xlu0
    %v944 = vpop.trf.xlu0
    %v945 = vpop.trf.xlu0
    %v946 = vpop.trf.xlu0
    %v947 = vpop.trf.xlu0
    %v948 = vpop.trf.xlu0
    %v949 = vpop.trf.xlu0
    %v950 = vpop.trf.xlu0
    %v952 = vsel %vm129, %v943, 0
    %954 = vmatpush.bf16.msra.mxu0 0
    %955 = vmatpush.bf16.msra.mxu0 0
    %956 = vmatpush.bf16.msra.mxu0 0
    %957 = vmatpush.bf16.msra.mxu0 0
    %958 = vmatpush.bf16.msra.mxu0 0
    %959 = vmatpush.bf16.msra.mxu0 0
    %960 = vmatpush.bf16.msra.mxu0 0
    %961 = vmatpush.bf16.msra.mxu0 %v812
    %962 = vmatmul.bf16.gmra.mxu0 %v952
    %v963 = vpop.f32.mrf.mxu0
    %v964 = vadd.f32 0.0, %v963
    %v965 = vpop.f32.mrf.mxu0
    %v966 = vadd.f32 0.0, %v965
    %967 = vdwg.mxu0
    %v969 = vrot.slane %v806, 1
    %970 = vrot.lane.b32.xlu0 %v969, 16
    %v971 = vpop.permute.xlu0 %970
    %v973 = vrot.slane %v806, 2
    %974 = vrot.lane.b32.xlu0 %v973, 32
    %v975 = vpop.permute.xlu0 %974
    %v977 = vrot.slane %v806, 3
    %978 = vrot.lane.b32.xlu0 %v977, 48
    %v979 = vpop.permute.xlu0 %978
    %v981 = vrot.slane %v806, 4
    %982 = vrot.lane.b32.xlu0 %v981, 64
    %v983 = vpop.permute.xlu0 %982
    %v985 = vrot.slane %v806, 5
    %986 = vrot.lane.b32.xlu0 %v985, 80
    %v987 = vpop.permute.xlu0 %986
    %v989 = vrot.slane %v806, 6
    %990 = vrot.lane.b32.xlu0 %v989, 96
    %v991 = vpop.permute.xlu0 %990
    %v993 = vrot.slane %v806, 7
    %994 = vrot.lane.b32.xlu0 %v993, 112
    %v995 = vpop.permute.xlu0 %994
    %v997 = vsel %vm129, %v806, %v971
    %v998 = vsel %vm210, %v997, %v975
    %v999 = vsel %vm212, %v998, %v979
    %v1000 = vsel %vm214, %v999, %v983
    %v1001 = vsel %vm216, %v1000, %v987
    %v1002 = vsel %vm218, %v1001, %v991
    %v1003 = vsel %vm220, %v1002, %v995
    %v1004 = vld [vmem:[#allocation7 + $0xe] sm:$0x1]
    %v1005 = vadd.f32 %v1003, %v1004
    %v1006 = vperm.slane %v1005, 0
    %1008 = vrot.lane.b32.xlu0 %v812, 120
    %v1009 = vpop.permute.xlu0 %1008
    %v1011 = vsel %vm225, %v1009, 0
    %1013 = vmatpush.bf16.msra.mxu0 0
    %1014 = vmatpush.bf16.msra.mxu0 0
    %1015 = vmatpush.bf16.msra.mxu0 0
    %1016 = vmatpush.bf16.msra.mxu0 0
    %1017 = vmatpush.bf16.msra.mxu0 0
    %1018 = vmatpush.bf16.msra.mxu0 0
    %1019 = vmatpush.bf16.msra.mxu0 0
    %1020 = vmatpush.bf16.msra.mxu0 %v231
    %1021 = vmatmul.bf16.gmra.mxu0 %v1011
    %v1022 = vpop.f32.mrf.mxu0
    %v1023 = vadd.f32 %v1006, %v1022
    %v1024 = vpop.f32.mrf.mxu0
    %v1025 = vadd.f32 %v1006, %v1024
    %1026 = vdwg.mxu0
    %v1027 = vmul.f32 %v1023, 0.2
    %v1028 = vmul.f32 %v1025, 0.2
    %v1029 = vmax.f32 %v1023, %v1027
    %v1030 = vmax.f32 %v1025, %v1028
    %v1031 = vld [vmem:[#allocation7 + $0xb] sm:$0x1]
    %v1032 = vperm.slane %v1031, 0
    %v1033 = vmul.f32 %v1029, %v1032
    %v1034 = vmul.f32 %v1030, %v1032
    %v1035 = vpack.c.bf16 %v1034, %v1033
    %1036 = vmatpush.bf16.msra.mxu0 %v295
    %1037 = vmatpush.bf16.msra.mxu0 %v294
    %1038 = vmatpush.bf16.msra.mxu0 %v293
    %1039 = vmatpush.bf16.msra.mxu0 %v292
    %1040 = vmatpush.bf16.msra.mxu0 %v291
    %1041 = vmatpush.bf16.msra.mxu0 %v290
    %1042 = vmatpush.bf16.msra.mxu0 %v289
    %1043 = vmatpush.bf16.msra.mxu0 %v288
    %1044 = vmatmul.bf16.gmra.mxu0 %v1035
    %v1045 = vpop.f32.mrf.mxu0
    %v1046 = vadd.f32 0.0, %v1045
    %v1047 = vpop.f32.mrf.mxu0
    %v1048 = vadd.f32 0.0, %v1047
    %1049 = vdwg.mxu0
    %v1050 = vsel %vm94, %v1046, -1e+30
    %v1051 = vsel %vm95, %v1048, -1e+30
    %v1052 = vsel %vm129, %v1050, -inf
    %v1053 = vsel %vm129, %v1051, -inf
    %v1054 = vmax.f32 %v1052, %v1053
    %v1055 = vrot.slane %v1054, 4
    %v1056 = vmax.f32 %v1054, %v1055
    %v1057 = vrot.slane %v1056, 2
    %v1058 = vmax.f32 %v1056, %v1057
    %v1059 = vrot.slane %v1058, 1
    %v1060 = vmax.f32 %v1058, %v1059
    %v1061 = vsub.f32 %v1050, %v1060
    %v1062 = vsub.f32 %v1051, %v1060
    %v1063 = vmul.f32 %v1061, 1.442695
    %v1064 = vpow.pop %v1063
    %v1065 = vmul.f32 %v1062, 1.442695
    %v1066 = vpow.pop %v1065
    %v1067 = vsel %vm129, %v1064, 0.0
    %v1068 = vsel %vm129, %v1066, 0.0
    %v1069 = vadd.f32 %v1067, %v1068
    %v1070 = vrot.slane %v1069, 4
    %v1071 = vadd.f32 %v1069, %v1070
    %v1072 = vrot.slane %v1071, 2
    %v1073 = vadd.f32 %v1071, %v1072
    %v1074 = vrot.slane %v1073, 1
    %v1075 = vadd.f32 %v1073, %v1074
    %v1076 = vrcp.pop %v1075
    %v1077 = vmul.f32 %v1075, %v1076
    %v1078 = vsub.f32 1.0, %v1077
    %v1079 = vmul.f32 %v1076, %v1078
    %v1080 = vadd.f32 %v1076, %v1079
    %vm1081 = vweird.f32 %v1075
    %vm1082 = vweird.f32 %v1076
    %vm1083 = vmor %vm1081, %vm1082
    %v1084 = vsel %vm1083, %v1076, %v1080
    %v1085 = vand.u32 2147483647, %v1075
    %vm1086 = vcmp.eq.f32.partialorder %v1085, 8.507059e+37
    %v1087 = vand.u32 %v1075, 2147483648
    %v1088 = vor.u32 1.1754944e-38, %v1087
    %v1089 = vsel %vm1086, %v1088, %v1084
    %v1090 = vmul.f32 %v1064, %v1089
    %v1091 = vmul.f32 %v1066, %v1089
    %v1092 = vpack.c.bf16 %v1091, %v1090
    %1093 = vxpose.xlu0.c.b16.start [1/8] %v1092, 128
    %1094 = vxpose.xlu0.c.b16.cont [2/8] 0, 128
    %1095 = vxpose.xlu0.c.b16.cont [3/8] 0, 128
    %1096 = vxpose.xlu0.c.b16.cont [4/8] 0, 128
    %1097 = vxpose.xlu0.c.b16.cont [5/8] 0, 128
    %1098 = vxpose.xlu0.c.b16.cont [6/8] 0, 128
    %1099 = vxpose.xlu0.c.b16.cont [7/8] 0, 128
    %1100 = vxpose.xlu0.c.b16.end [8/8] 0, 128
    %v1101 = vpop.trf.xlu0
    %v1102 = vpop.trf.xlu0
    %v1103 = vpop.trf.xlu0
    %v1104 = vpop.trf.xlu0
    %v1105 = vpop.trf.xlu0
    %v1106 = vpop.trf.xlu0
    %v1107 = vpop.trf.xlu0
    %v1108 = vpop.trf.xlu0
    %v1111 = vsel %vm129, %v1101, 0
    %1113 = vmatpush.bf16.msra.mxu0 0
    %1114 = vmatpush.bf16.msra.mxu0 0
    %1115 = vmatpush.bf16.msra.mxu0 0
    %1116 = vmatpush.bf16.msra.mxu0 0
    %1117 = vmatpush.bf16.msra.mxu0 0
    %1118 = vmatpush.bf16.msra.mxu0 0
    %1119 = vmatpush.bf16.msra.mxu0 0
    %1120 = vmatpush.bf16.msra.mxu0 %v1009
    %1121 = vmatmul.bf16.gmra.mxu0 %v1111
    %v1122 = vpop.f32.mrf.mxu0
    %v1123 = vadd.f32 0.0, %v1122
    %v1124 = vpop.f32.mrf.mxu0
    %v1125 = vadd.f32 0.0, %v1124
    %1126 = vdwg.mxu0
    %v1128 = vrot.slane %v809, 1
    %1129 = vrot.lane.b32.xlu0 %v1128, 16
    %v1130 = vpop.permute.xlu0 %1129
    %v1132 = vrot.slane %v809, 2
    %1133 = vrot.lane.b32.xlu0 %v1132, 32
    %v1134 = vpop.permute.xlu0 %1133
    %v1136 = vrot.slane %v809, 3
    %1137 = vrot.lane.b32.xlu0 %v1136, 48
    %v1138 = vpop.permute.xlu0 %1137
    %v1140 = vrot.slane %v809, 4
    %1141 = vrot.lane.b32.xlu0 %v1140, 64
    %v1142 = vpop.permute.xlu0 %1141
    %v1144 = vrot.slane %v809, 5
    %1145 = vrot.lane.b32.xlu0 %v1144, 80
    %v1146 = vpop.permute.xlu0 %1145
    %v1148 = vrot.slane %v809, 6
    %1149 = vrot.lane.b32.xlu0 %v1148, 96
    %v1150 = vpop.permute.xlu0 %1149
    %v1152 = vrot.slane %v809, 7
    %1153 = vrot.lane.b32.xlu0 %v1152, 112
    %v1154 = vpop.permute.xlu0 %1153
    %v1156 = vsel %vm129, %v809, %v1130
    %v1157 = vsel %vm210, %v1156, %v1134
    %v1158 = vsel %vm212, %v1157, %v1138
    %v1159 = vsel %vm214, %v1158, %v1142
    %v1160 = vsel %vm216, %v1159, %v1146
    %v1161 = vsel %vm218, %v1160, %v1150
    %v1162 = vsel %vm220, %v1161, %v1154
    %v1163 = vld [vmem:[#allocation7 + $0xf] sm:$0x1]
    %v1164 = vadd.f32 %v1162, %v1163
    %v1165 = vperm.slane %v1164, 0
    %1166 = vrot.lane.b32.xlu0 %v812, 112
    %v1167 = vpop.permute.xlu0 %1166
    %v1169 = vsel %vm225, %v1167, 0
    %1171 = vmatpush.bf16.msra.mxu0 0
    %1172 = vmatpush.bf16.msra.mxu0 0
    %1173 = vmatpush.bf16.msra.mxu0 0
    %1174 = vmatpush.bf16.msra.mxu0 0
    %1175 = vmatpush.bf16.msra.mxu0 0
    %1176 = vmatpush.bf16.msra.mxu0 0
    %1177 = vmatpush.bf16.msra.mxu0 0
    %1178 = vmatpush.bf16.msra.mxu0 %v231
    %1179 = vmatmul.bf16.gmra.mxu0 %v1169
    %v1180 = vpop.f32.mrf.mxu0
    %v1181 = vadd.f32 %v1165, %v1180
    %v1182 = vpop.f32.mrf.mxu0
    %v1183 = vadd.f32 %v1165, %v1182
    %1184 = vdwg.mxu0
    %v1185 = vmul.f32 %v1181, 0.2
    %v1186 = vmul.f32 %v1183, 0.2
    %v1187 = vmax.f32 %v1181, %v1185
    %v1188 = vmax.f32 %v1183, %v1186
    %v1189 = vld [vmem:[#allocation7 + $0xc] sm:$0x1]
    %v1190 = vperm.slane %v1189, 0
    %v1191 = vmul.f32 %v1187, %v1190
    %v1192 = vmul.f32 %v1188, %v1190
    %v1193 = vpack.c.bf16 %v1192, %v1191
    %1194 = vmatpush.bf16.msra.mxu0 %v295
    %1195 = vmatpush.bf16.msra.mxu0 %v294
    %1196 = vmatpush.bf16.msra.mxu0 %v293
    %1197 = vmatpush.bf16.msra.mxu0 %v292
    %1198 = vmatpush.bf16.msra.mxu0 %v291
    %1199 = vmatpush.bf16.msra.mxu0 %v290
    %1200 = vmatpush.bf16.msra.mxu0 %v289
    %1201 = vmatpush.bf16.msra.mxu0 %v288
    %1202 = vmatmul.bf16.gmra.mxu0 %v1193
    %v1203 = vpop.f32.mrf.mxu0
    %v1204 = vadd.f32 0.0, %v1203
    %v1205 = vpop.f32.mrf.mxu0
    %v1206 = vadd.f32 0.0, %v1205
    %1207 = vdwg.mxu0
    %v1208 = vsel %vm94, %v1204, -1e+30
    %v1209 = vsel %vm95, %v1206, -1e+30
    %v1210 = vsel %vm129, %v1208, -inf
    %v1211 = vsel %vm129, %v1209, -inf
    %v1212 = vmax.f32 %v1210, %v1211
    %v1213 = vrot.slane %v1212, 4
    %v1214 = vmax.f32 %v1212, %v1213
    %v1215 = vrot.slane %v1214, 2
    %v1216 = vmax.f32 %v1214, %v1215
    %v1217 = vrot.slane %v1216, 1
    %v1218 = vmax.f32 %v1216, %v1217
    %v1219 = vsub.f32 %v1208, %v1218
    %v1220 = vsub.f32 %v1209, %v1218
    %v1221 = vmul.f32 %v1219, 1.442695
    %v1222 = vpow.pop %v1221
    %v1223 = vmul.f32 %v1220, 1.442695
    %v1224 = vpow.pop %v1223
    %v1225 = vsel %vm129, %v1222, 0.0
    %v1226 = vsel %vm129, %v1224, 0.0
    %v1227 = vadd.f32 %v1225, %v1226
    %v1228 = vrot.slane %v1227, 4
    %v1229 = vadd.f32 %v1227, %v1228
    %v1230 = vrot.slane %v1229, 2
    %v1231 = vadd.f32 %v1229, %v1230
    %v1232 = vrot.slane %v1231, 1
    %v1233 = vadd.f32 %v1231, %v1232
    %v1234 = vrcp.pop %v1233
    %v1235 = vmul.f32 %v1233, %v1234
    %v1236 = vsub.f32 1.0, %v1235
    %v1237 = vmul.f32 %v1234, %v1236
    %v1238 = vadd.f32 %v1234, %v1237
    %vm1239 = vweird.f32 %v1233
    %vm1240 = vweird.f32 %v1234
    %vm1241 = vmor %vm1239, %vm1240
    %v1242 = vsel %vm1241, %v1234, %v1238
    %v1243 = vand.u32 2147483647, %v1233
    %vm1244 = vcmp.eq.f32.partialorder %v1243, 8.507059e+37
    %v1245 = vand.u32 %v1233, 2147483648
    %v1246 = vor.u32 1.1754944e-38, %v1245
    %v1247 = vsel %vm1244, %v1246, %v1242
    %v1248 = vmul.f32 %v1222, %v1247
    %v1249 = vmul.f32 %v1224, %v1247
    %v1250 = vpack.c.bf16 %v1249, %v1248
    %1251 = vxpose.xlu0.c.b16.start [1/8] %v1250, 128
    %1252 = vxpose.xlu0.c.b16.cont [2/8] 0, 128
    %1253 = vxpose.xlu0.c.b16.cont [3/8] 0, 128
    %1254 = vxpose.xlu0.c.b16.cont [4/8] 0, 128
    %1255 = vxpose.xlu0.c.b16.cont [5/8] 0, 128
    %1256 = vxpose.xlu0.c.b16.cont [6/8] 0, 128
    %1257 = vxpose.xlu0.c.b16.cont [7/8] 0, 128
    %1258 = vxpose.xlu0.c.b16.end [8/8] 0, 128
    %v1259 = vpop.trf.xlu0
    %v1260 = vpop.trf.xlu0
    %v1261 = vpop.trf.xlu0
    %v1262 = vpop.trf.xlu0
    %v1263 = vpop.trf.xlu0
    %v1264 = vpop.trf.xlu0
    %v1265 = vpop.trf.xlu0
    %v1266 = vpop.trf.xlu0
    %v1269 = vsel %vm129, %v1259, 0
    %1271 = vmatpush.bf16.msra.mxu0 0
    %1272 = vmatpush.bf16.msra.mxu0 0
    %1273 = vmatpush.bf16.msra.mxu0 0
    %1274 = vmatpush.bf16.msra.mxu0 0
    %1275 = vmatpush.bf16.msra.mxu0 0
    %1276 = vmatpush.bf16.msra.mxu0 0
    %1277 = vmatpush.bf16.msra.mxu0 0
    %1278 = vmatpush.bf16.msra.mxu0 %v1167
    %1279 = vmatmul.bf16.gmra.mxu0 %v1269
    %v1280 = vpop.f32.mrf.mxu0
    %v1281 = vadd.f32 0.0, %v1280
    %v1282 = vpop.f32.mrf.mxu0
    %v1283 = vadd.f32 0.0, %v1282
    %1284 = vdwg.mxu0
    %1287 = vrot.lane.b32.xlu0 %v1123, 8
    %v1288 = vpop.permute.xlu0 %1287
    %1289 = vrot.lane.b32.xlu0 %v1125, 8
    %v1290 = vpop.permute.xlu0 %1289
    %1295 = vrot.lane.b32.xlu0 %v1281, 16
    %v1296 = vpop.permute.xlu0 %1295
    %1297 = vrot.lane.b32.xlu0 %v1283, 16
    %v1298 = vpop.permute.xlu0 %1297
    %v1301 = vsel %vm225, %v964, %v1288
    %v1302 = vsel %vm225, %v966, %v1290
    %v1303 = vsel %vm129, %v1301, %v1296
    %v1304 = vsel %vm129, %v1302, %v1298
    %v1305 = vld [vmem:[#allocation7 + $0x10] sm:$0x1]
    %v1306 = vld [vmem:[#allocation7 + $0x11] sm:$0x1]
    %v1307 = vperm.slane %v1305, 0
    %v1308 = vmul.f32 %v1303, %v1307
    %v1309 = vmul.f32 %v1304, %v1307
    %v1310 = vperm.slane %v1306, 0
    %v1311 = vadd.f32 %v1308, %v1310
    %v1312 = vadd.f32 %v1309, %v1310
    %v1313 = vmax.f32 %v1311, 0.0
    %v1314 = vmax.f32 %v1312, 0.0
    %v1315 = vpack.c.bf16 %v1314, %v1313
    %v1316 = vld [vmem:[#allocation6 + $0x38] sm:$0xf]
    %v1317 = vld [vmem:[#allocation6 + $0x3c] sm:$0xf]
    %v1318 = vld [vmem:[#allocation6 + $0x40] sm:$0xf]
    %v1319 = vld [vmem:[#allocation6 + $0x48] sm:$0xf]
    %v1320 = vld [vmem:[#allocation6 + $0x4c] sm:$0xf]
    %v1321 = vld [vmem:[#allocation6 + $0x50] sm:$0xf]
    %v1322 = vld [vmem:[#allocation7 + $0x12] sm:$0x1]
    %v1323 = vperm.slane %v1322, 0
    %v1327 = vunpack.c.l.b16 %v1316
    %v1328 = vunpack.c.l.b16 %v1317
    %v1329 = vunpack.c.l.b16 %v1318
    %v1330 = vpack.c.b16 %v1328, %v1327
    %v1331 = vpack.c.b16 %v1329, %v1329
    %v1334 = vsel %vm759, %v1315, 0
    %v1337 = vsel %vm229, %v1331, 0
    %1339 = vmatpush.bf16.msra.mxu0 0
    %1340 = vmatpush.bf16.msra.mxu0 0
    %1341 = vmatpush.bf16.msra.mxu0 0
    %1342 = vmatpush.bf16.msra.mxu0 0
    %1343 = vmatpush.bf16.msra.mxu0 0
    %1344 = vmatpush.bf16.msra.mxu0 0
    %1345 = vmatpush.bf16.msra.mxu0 %v1337
    %1346 = vmatpush.bf16.msra.mxu0 %v1330
    %1347 = vmatmul.bf16.gmra.mxu0 %v1334
    %v1348 = vpop.f32.mrf.mxu0
    %v1349 = vadd.f32 %v1323, %v1348
    %v1350 = vpop.f32.mrf.mxu0
    %v1351 = vadd.f32 %v1323, %v1350
    %1352 = vdwg.mxu0
    %v1356 = vunpack.c.l.b16 %v1319
    %v1357 = vunpack.c.l.b16 %v1320
    %v1358 = vunpack.c.l.b16 %v1321
    %v1359 = vpack.c.b16 %v1357, %v1356
    %v1360 = vpack.c.b16 %v1358, %v1358
    %v1362 = vsel %vm759, %v1359, 0
    %v1365 = vsel %vm759, %v1360, 0
    %1367 = vmatpush.bf16.xpose.msra.mxu0 0
    %1368 = vmatpush.bf16.xpose.msra.mxu0 0
    %1369 = vmatpush.bf16.xpose.msra.mxu0 0
    %1370 = vmatpush.bf16.xpose.msra.mxu0 0
    %1371 = vmatpush.bf16.xpose.msra.mxu0 0
    %1372 = vmatpush.bf16.xpose.msra.mxu0 0
    %1373 = vmatpush.bf16.xpose.msra.mxu0 0
    %1374 = vmatpush.bf16.xpose.msra.mxu0 %v1334
    %1375 = vmatmul.bf16.gmra.mxu0 %v1362
    %v1376 = vpop.f32.mrf.mxu0
    %v1377 = vadd.f32 0.0, %v1376
    %v1378 = vpop.f32.mrf.mxu0
    %v1379 = vadd.f32 0.0, %v1378
    %1380 = vmatmul.bf16.gmra.mxu0 %v1365
    %v1381 = vpop.f32.mrf.mxu0
    %v1382 = vadd.f32 0.0, %v1381
    %v1383 = vpop.f32.mrf.mxu0
    %1384 = vdwg.mxu0
    %v1385 = vpack.c.bf16 %v1351, %v1349
    %v1387 = vrot.slane %v1377, 1
    %1388 = vrot.lane.b32.xlu0 %v1387, 16
    %v1389 = vpop.permute.xlu0 %1388
    %v1391 = vrot.slane %v1377, 2
    %1392 = vrot.lane.b32.xlu0 %v1391, 32
    %v1393 = vpop.permute.xlu0 %1392
    %v1395 = vrot.slane %v1377, 3
    %1396 = vrot.lane.b32.xlu0 %v1395, 48
    %v1397 = vpop.permute.xlu0 %1396
    %v1399 = vrot.slane %v1377, 4
    %1400 = vrot.lane.b32.xlu0 %v1399, 64
    %v1401 = vpop.permute.xlu0 %1400
    %v1403 = vrot.slane %v1377, 5
    %1404 = vrot.lane.b32.xlu0 %v1403, 80
    %v1405 = vpop.permute.xlu0 %1404
    %v1407 = vrot.slane %v1377, 6
    %1408 = vrot.lane.b32.xlu0 %v1407, 96
    %v1409 = vpop.permute.xlu0 %1408
    %v1411 = vrot.slane %v1377, 7
    %1412 = vrot.lane.b32.xlu0 %v1411, 112
    %v1413 = vpop.permute.xlu0 %1412
    %v1415 = vsel %vm129, %v1377, %v1389
    %v1416 = vsel %vm210, %v1415, %v1393
    %v1417 = vsel %vm212, %v1416, %v1397
    %v1418 = vsel %vm214, %v1417, %v1401
    %v1419 = vsel %vm216, %v1418, %v1405
    %v1420 = vsel %vm218, %v1419, %v1409
    %v1421 = vsel %vm220, %v1420, %v1413
    %v1422 = vld [vmem:[#allocation7 + $0x16] sm:$0x1]
    %v1423 = vadd.f32 %v1421, %v1422
    %v1424 = vperm.slane %v1423, 0
    %v1426 = vsel %vm225, %v1385, 0
    %1428 = vmatpush.bf16.msra.mxu0 0
    %1429 = vmatpush.bf16.msra.mxu0 0
    %1430 = vmatpush.bf16.msra.mxu0 0
    %1431 = vmatpush.bf16.msra.mxu0 0
    %1432 = vmatpush.bf16.msra.mxu0 0
    %1433 = vmatpush.bf16.msra.mxu0 0
    %1434 = vmatpush.bf16.msra.mxu0 0
    %1435 = vmatpush.bf16.msra.mxu0 %v231
    %1436 = vmatmul.bf16.gmra.mxu0 %v1426
    %v1437 = vpop.f32.mrf.mxu0
    %v1438 = vadd.f32 %v1424, %v1437
    %v1439 = vpop.f32.mrf.mxu0
    %v1440 = vadd.f32 %v1424, %v1439
    %1441 = vdwg.mxu0
    %v1442 = vmul.f32 %v1438, 0.2
    %v1443 = vmul.f32 %v1440, 0.2
    %v1444 = vmax.f32 %v1438, %v1442
    %v1445 = vmax.f32 %v1440, %v1443
    %v1446 = vld [vmem:[#allocation7 + $0x13] sm:$0x1]
    %v1447 = vperm.slane %v1446, 0
    %v1448 = vmul.f32 %v1444, %v1447
    %v1449 = vmul.f32 %v1445, %v1447
    %v1450 = vpack.c.bf16 %v1449, %v1448
    %1451 = vmatpush.bf16.msra.mxu0 %v295
    %1452 = vmatpush.bf16.msra.mxu0 %v294
    %1453 = vmatpush.bf16.msra.mxu0 %v293
    %1454 = vmatpush.bf16.msra.mxu0 %v292
    %1455 = vmatpush.bf16.msra.mxu0 %v291
    %1456 = vmatpush.bf16.msra.mxu0 %v290
    %1457 = vmatpush.bf16.msra.mxu0 %v289
    %1458 = vmatpush.bf16.msra.mxu0 %v288
    %1459 = vmatmul.bf16.gmra.mxu0 %v1450
    %v1460 = vpop.f32.mrf.mxu0
    %v1461 = vadd.f32 0.0, %v1460
    %v1462 = vpop.f32.mrf.mxu0
    %v1463 = vadd.f32 0.0, %v1462
    %1464 = vdwg.mxu0
    %v1465 = vsel %vm94, %v1461, -1e+30
    %v1466 = vsel %vm95, %v1463, -1e+30
    %v1467 = vsel %vm129, %v1465, -inf
    %v1468 = vsel %vm129, %v1466, -inf
    %v1469 = vmax.f32 %v1467, %v1468
    %v1470 = vrot.slane %v1469, 4
    %v1471 = vmax.f32 %v1469, %v1470
    %v1472 = vrot.slane %v1471, 2
    %v1473 = vmax.f32 %v1471, %v1472
    %v1474 = vrot.slane %v1473, 1
    %v1475 = vmax.f32 %v1473, %v1474
    %v1476 = vsub.f32 %v1465, %v1475
    %v1477 = vsub.f32 %v1466, %v1475
    %v1478 = vmul.f32 %v1476, 1.442695
    %v1479 = vpow.pop %v1478
    %v1480 = vmul.f32 %v1477, 1.442695
    %v1481 = vpow.pop %v1480
    %v1482 = vsel %vm129, %v1479, 0.0
    %v1483 = vsel %vm129, %v1481, 0.0
    %v1484 = vadd.f32 %v1482, %v1483
    %v1485 = vrot.slane %v1484, 4
    %v1486 = vadd.f32 %v1484, %v1485
    %v1487 = vrot.slane %v1486, 2
    %v1488 = vadd.f32 %v1486, %v1487
    %v1489 = vrot.slane %v1488, 1
    %v1490 = vadd.f32 %v1488, %v1489
    %v1491 = vrcp.pop %v1490
    %v1492 = vmul.f32 %v1490, %v1491
    %v1493 = vsub.f32 1.0, %v1492
    %v1494 = vmul.f32 %v1491, %v1493
    %v1495 = vadd.f32 %v1491, %v1494
    %vm1496 = vweird.f32 %v1490
    %vm1497 = vweird.f32 %v1491
    %vm1498 = vmor %vm1496, %vm1497
    %v1499 = vsel %vm1498, %v1491, %v1495
    %v1500 = vand.u32 2147483647, %v1490
    %vm1501 = vcmp.eq.f32.partialorder %v1500, 8.507059e+37
    %v1502 = vand.u32 %v1490, 2147483648
    %v1503 = vor.u32 1.1754944e-38, %v1502
    %v1504 = vsel %vm1501, %v1503, %v1499
    %v1505 = vmul.f32 %v1479, %v1504
    %v1506 = vmul.f32 %v1481, %v1504
    %v1507 = vpack.c.bf16 %v1506, %v1505
    %1508 = vxpose.xlu0.c.b16.start [1/8] %v1507, 128
    %1509 = vxpose.xlu0.c.b16.cont [2/8] 0, 128
    %1510 = vxpose.xlu0.c.b16.cont [3/8] 0, 128
    %1511 = vxpose.xlu0.c.b16.cont [4/8] 0, 128
    %1512 = vxpose.xlu0.c.b16.cont [5/8] 0, 128
    %1513 = vxpose.xlu0.c.b16.cont [6/8] 0, 128
    %1514 = vxpose.xlu0.c.b16.cont [7/8] 0, 128
    %1515 = vxpose.xlu0.c.b16.end [8/8] 0, 128
    %v1516 = vpop.trf.xlu0
    %v1517 = vpop.trf.xlu0
    %v1518 = vpop.trf.xlu0
    %v1519 = vpop.trf.xlu0
    %v1520 = vpop.trf.xlu0
    %v1521 = vpop.trf.xlu0
    %v1522 = vpop.trf.xlu0
    %v1523 = vpop.trf.xlu0
    %v1525 = vsel %vm129, %v1516, 0
    %1527 = vmatpush.bf16.msra.mxu0 0
    %1528 = vmatpush.bf16.msra.mxu0 0
    %1529 = vmatpush.bf16.msra.mxu0 0
    %1530 = vmatpush.bf16.msra.mxu0 0
    %1531 = vmatpush.bf16.msra.mxu0 0
    %1532 = vmatpush.bf16.msra.mxu0 0
    %1533 = vmatpush.bf16.msra.mxu0 0
    %1534 = vmatpush.bf16.msra.mxu0 %v1385
    %1535 = vmatmul.bf16.gmra.mxu0 %v1525
    %v1536 = vpop.f32.mrf.mxu0
    %v1537 = vadd.f32 0.0, %v1536
    %v1538 = vpop.f32.mrf.mxu0
    %v1539 = vadd.f32 0.0, %v1538
    %1540 = vdwg.mxu0
    %v1542 = vrot.slane %v1379, 1
    %1543 = vrot.lane.b32.xlu0 %v1542, 16
    %v1544 = vpop.permute.xlu0 %1543
    %v1546 = vrot.slane %v1379, 2
    %1547 = vrot.lane.b32.xlu0 %v1546, 32
    %v1548 = vpop.permute.xlu0 %1547
    %v1550 = vrot.slane %v1379, 3
    %1551 = vrot.lane.b32.xlu0 %v1550, 48
    %v1552 = vpop.permute.xlu0 %1551
    %v1554 = vrot.slane %v1379, 4
    %1555 = vrot.lane.b32.xlu0 %v1554, 64
    %v1556 = vpop.permute.xlu0 %1555
    %v1558 = vrot.slane %v1379, 5
    %1559 = vrot.lane.b32.xlu0 %v1558, 80
    %v1560 = vpop.permute.xlu0 %1559
    %v1562 = vrot.slane %v1379, 6
    %1563 = vrot.lane.b32.xlu0 %v1562, 96
    %v1564 = vpop.permute.xlu0 %1563
    %v1566 = vrot.slane %v1379, 7
    %1567 = vrot.lane.b32.xlu0 %v1566, 112
    %v1568 = vpop.permute.xlu0 %1567
    %v1570 = vsel %vm129, %v1379, %v1544
    %v1571 = vsel %vm210, %v1570, %v1548
    %v1572 = vsel %vm212, %v1571, %v1552
    %v1573 = vsel %vm214, %v1572, %v1556
    %v1574 = vsel %vm216, %v1573, %v1560
    %v1575 = vsel %vm218, %v1574, %v1564
    %v1576 = vsel %vm220, %v1575, %v1568
    %v1577 = vld [vmem:[#allocation7 + $0x17] sm:$0x1]
    %v1578 = vadd.f32 %v1576, %v1577
    %v1579 = vperm.slane %v1578, 0
    %1581 = vrot.lane.b32.xlu0 %v1385, 120
    %v1582 = vpop.permute.xlu0 %1581
    %v1584 = vsel %vm225, %v1582, 0
    %1586 = vmatpush.bf16.msra.mxu0 0
    %1587 = vmatpush.bf16.msra.mxu0 0
    %1588 = vmatpush.bf16.msra.mxu0 0
    %1589 = vmatpush.bf16.msra.mxu0 0
    %1590 = vmatpush.bf16.msra.mxu0 0
    %1591 = vmatpush.bf16.msra.mxu0 0
    %1592 = vmatpush.bf16.msra.mxu0 0
    %1593 = vmatpush.bf16.msra.mxu0 %v231
    %1594 = vmatmul.bf16.gmra.mxu0 %v1584
    %v1595 = vpop.f32.mrf.mxu0
    %v1596 = vadd.f32 %v1579, %v1595
    %v1597 = vpop.f32.mrf.mxu0
    %v1598 = vadd.f32 %v1579, %v1597
    %1599 = vdwg.mxu0
    %v1600 = vmul.f32 %v1596, 0.2
    %v1601 = vmul.f32 %v1598, 0.2
    %v1602 = vmax.f32 %v1596, %v1600
    %v1603 = vmax.f32 %v1598, %v1601
    %v1604 = vld [vmem:[#allocation7 + $0x14] sm:$0x1]
    %v1605 = vperm.slane %v1604, 0
    %v1606 = vmul.f32 %v1602, %v1605
    %v1607 = vmul.f32 %v1603, %v1605
    %v1608 = vpack.c.bf16 %v1607, %v1606
    %1609 = vmatpush.bf16.msra.mxu0 %v295
    %1610 = vmatpush.bf16.msra.mxu0 %v294
    %1611 = vmatpush.bf16.msra.mxu0 %v293
    %1612 = vmatpush.bf16.msra.mxu0 %v292
    %1613 = vmatpush.bf16.msra.mxu0 %v291
    %1614 = vmatpush.bf16.msra.mxu0 %v290
    %1615 = vmatpush.bf16.msra.mxu0 %v289
    %1616 = vmatpush.bf16.msra.mxu0 %v288
    %1617 = vmatmul.bf16.gmra.mxu0 %v1608
    %v1618 = vpop.f32.mrf.mxu0
    %v1619 = vadd.f32 0.0, %v1618
    %v1620 = vpop.f32.mrf.mxu0
    %v1621 = vadd.f32 0.0, %v1620
    %1622 = vdwg.mxu0
    %v1623 = vsel %vm94, %v1619, -1e+30
    %v1624 = vsel %vm95, %v1621, -1e+30
    %v1625 = vsel %vm129, %v1623, -inf
    %v1626 = vsel %vm129, %v1624, -inf
    %v1627 = vmax.f32 %v1625, %v1626
    %v1628 = vrot.slane %v1627, 4
    %v1629 = vmax.f32 %v1627, %v1628
    %v1630 = vrot.slane %v1629, 2
    %v1631 = vmax.f32 %v1629, %v1630
    %v1632 = vrot.slane %v1631, 1
    %v1633 = vmax.f32 %v1631, %v1632
    %v1634 = vsub.f32 %v1623, %v1633
    %v1635 = vsub.f32 %v1624, %v1633
    %v1636 = vmul.f32 %v1634, 1.442695
    %v1637 = vpow.pop %v1636
    %v1638 = vmul.f32 %v1635, 1.442695
    %v1639 = vpow.pop %v1638
    %v1640 = vsel %vm129, %v1637, 0.0
    %v1641 = vsel %vm129, %v1639, 0.0
    %v1642 = vadd.f32 %v1640, %v1641
    %v1643 = vrot.slane %v1642, 4
    %v1644 = vadd.f32 %v1642, %v1643
    %v1645 = vrot.slane %v1644, 2
    %v1646 = vadd.f32 %v1644, %v1645
    %v1647 = vrot.slane %v1646, 1
    %v1648 = vadd.f32 %v1646, %v1647
    %v1649 = vrcp.pop %v1648
    %v1650 = vmul.f32 %v1648, %v1649
    %v1651 = vsub.f32 1.0, %v1650
    %v1652 = vmul.f32 %v1649, %v1651
    %v1653 = vadd.f32 %v1649, %v1652
    %vm1654 = vweird.f32 %v1648
    %vm1655 = vweird.f32 %v1649
    %vm1656 = vmor %vm1654, %vm1655
    %v1657 = vsel %vm1656, %v1649, %v1653
    %v1658 = vand.u32 2147483647, %v1648
    %vm1659 = vcmp.eq.f32.partialorder %v1658, 8.507059e+37
    %v1660 = vand.u32 %v1648, 2147483648
    %v1661 = vor.u32 1.1754944e-38, %v1660
    %v1662 = vsel %vm1659, %v1661, %v1657
    %v1663 = vmul.f32 %v1637, %v1662
    %v1664 = vmul.f32 %v1639, %v1662
    %v1665 = vpack.c.bf16 %v1664, %v1663
    %1666 = vxpose.xlu0.c.b16.start [1/8] %v1665, 128
    %1667 = vxpose.xlu0.c.b16.cont [2/8] 0, 128
    %1668 = vxpose.xlu0.c.b16.cont [3/8] 0, 128
    %1669 = vxpose.xlu0.c.b16.cont [4/8] 0, 128
    %1670 = vxpose.xlu0.c.b16.cont [5/8] 0, 128
    %1671 = vxpose.xlu0.c.b16.cont [6/8] 0, 128
    %1672 = vxpose.xlu0.c.b16.cont [7/8] 0, 128
    %1673 = vxpose.xlu0.c.b16.end [8/8] 0, 128
    %v1674 = vpop.trf.xlu0
    %v1675 = vpop.trf.xlu0
    %v1676 = vpop.trf.xlu0
    %v1677 = vpop.trf.xlu0
    %v1678 = vpop.trf.xlu0
    %v1679 = vpop.trf.xlu0
    %v1680 = vpop.trf.xlu0
    %v1681 = vpop.trf.xlu0
    %v1684 = vsel %vm129, %v1674, 0
    %1686 = vmatpush.bf16.msra.mxu0 0
    %1687 = vmatpush.bf16.msra.mxu0 0
    %1688 = vmatpush.bf16.msra.mxu0 0
    %1689 = vmatpush.bf16.msra.mxu0 0
    %1690 = vmatpush.bf16.msra.mxu0 0
    %1691 = vmatpush.bf16.msra.mxu0 0
    %1692 = vmatpush.bf16.msra.mxu0 0
    %1693 = vmatpush.bf16.msra.mxu0 %v1582
    %1694 = vmatmul.bf16.gmra.mxu0 %v1684
    %v1695 = vpop.f32.mrf.mxu0
    %v1696 = vadd.f32 0.0, %v1695
    %v1697 = vpop.f32.mrf.mxu0
    %v1698 = vadd.f32 0.0, %v1697
    %1699 = vdwg.mxu0
    %v1701 = vrot.slane %v1382, 1
    %1702 = vrot.lane.b32.xlu0 %v1701, 16
    %v1703 = vpop.permute.xlu0 %1702
    %v1705 = vrot.slane %v1382, 2
    %1706 = vrot.lane.b32.xlu0 %v1705, 32
    %v1707 = vpop.permute.xlu0 %1706
    %v1709 = vrot.slane %v1382, 3
    %1710 = vrot.lane.b32.xlu0 %v1709, 48
    %v1711 = vpop.permute.xlu0 %1710
    %v1713 = vrot.slane %v1382, 4
    %1714 = vrot.lane.b32.xlu0 %v1713, 64
    %v1715 = vpop.permute.xlu0 %1714
    %v1717 = vrot.slane %v1382, 5
    %1718 = vrot.lane.b32.xlu0 %v1717, 80
    %v1719 = vpop.permute.xlu0 %1718
    %v1721 = vrot.slane %v1382, 6
    %1722 = vrot.lane.b32.xlu0 %v1721, 96
    %v1723 = vpop.permute.xlu0 %1722
    %v1725 = vrot.slane %v1382, 7
    %1726 = vrot.lane.b32.xlu0 %v1725, 112
    %v1727 = vpop.permute.xlu0 %1726
    %v1729 = vsel %vm129, %v1382, %v1703
    %v1730 = vsel %vm210, %v1729, %v1707
    %v1731 = vsel %vm212, %v1730, %v1711
    %v1732 = vsel %vm214, %v1731, %v1715
    %v1733 = vsel %vm216, %v1732, %v1719
    %v1734 = vsel %vm218, %v1733, %v1723
    %v1735 = vsel %vm220, %v1734, %v1727
    %v1736 = vld [vmem:[#allocation7 + $0x18] sm:$0x1]
    %v1737 = vadd.f32 %v1735, %v1736
    %v1738 = vperm.slane %v1737, 0
    %1739 = vrot.lane.b32.xlu0 %v1385, 112
    %v1740 = vpop.permute.xlu0 %1739
    %v1742 = vsel %vm225, %v1740, 0
    %1744 = vmatpush.bf16.msra.mxu0 0
    %1745 = vmatpush.bf16.msra.mxu0 0
    %1746 = vmatpush.bf16.msra.mxu0 0
    %1747 = vmatpush.bf16.msra.mxu0 0
    %1748 = vmatpush.bf16.msra.mxu0 0
    %1749 = vmatpush.bf16.msra.mxu0 0
    %1750 = vmatpush.bf16.msra.mxu0 0
    %1751 = vmatpush.bf16.msra.mxu0 %v231
    %1752 = vmatmul.bf16.gmra.mxu0 %v1742
    %v1753 = vpop.f32.mrf.mxu0
    %v1754 = vadd.f32 %v1738, %v1753
    %v1755 = vpop.f32.mrf.mxu0
    %v1756 = vadd.f32 %v1738, %v1755
    %1757 = vdwg.mxu0
    %v1758 = vmul.f32 %v1754, 0.2
    %v1759 = vmul.f32 %v1756, 0.2
    %v1760 = vmax.f32 %v1754, %v1758
    %v1761 = vmax.f32 %v1756, %v1759
    %v1762 = vld [vmem:[#allocation7 + $0x15] sm:$0x1]
    %v1763 = vperm.slane %v1762, 0
    %v1764 = vmul.f32 %v1760, %v1763
    %v1765 = vmul.f32 %v1761, %v1763
    %v1766 = vpack.c.bf16 %v1765, %v1764
    %1767 = vmatpush.bf16.msra.mxu0 %v295
    %1768 = vmatpush.bf16.msra.mxu0 %v294
    %1769 = vmatpush.bf16.msra.mxu0 %v293
    %1770 = vmatpush.bf16.msra.mxu0 %v292
    %1771 = vmatpush.bf16.msra.mxu0 %v291
    %1772 = vmatpush.bf16.msra.mxu0 %v290
    %1773 = vmatpush.bf16.msra.mxu0 %v289
    %1774 = vmatpush.bf16.msra.mxu0 %v288
    %1775 = vmatmul.bf16.gmra.mxu0 %v1766
    %v1776 = vpop.f32.mrf.mxu0
    %v1777 = vadd.f32 0.0, %v1776
    %v1778 = vpop.f32.mrf.mxu0
    %v1779 = vadd.f32 0.0, %v1778
    %1780 = vdwg.mxu0
    %v1781 = vsel %vm94, %v1777, -1e+30
    %v1782 = vsel %vm95, %v1779, -1e+30
    %v1783 = vsel %vm129, %v1781, -inf
    %v1784 = vsel %vm129, %v1782, -inf
    %v1785 = vmax.f32 %v1783, %v1784
    %v1786 = vrot.slane %v1785, 4
    %v1787 = vmax.f32 %v1785, %v1786
    %v1788 = vrot.slane %v1787, 2
    %v1789 = vmax.f32 %v1787, %v1788
    %v1790 = vrot.slane %v1789, 1
    %v1791 = vmax.f32 %v1789, %v1790
    %v1792 = vsub.f32 %v1781, %v1791
    %v1793 = vsub.f32 %v1782, %v1791
    %v1794 = vmul.f32 %v1792, 1.442695
    %v1795 = vpow.pop %v1794
    %v1796 = vmul.f32 %v1793, 1.442695
    %v1797 = vpow.pop %v1796
    %v1798 = vsel %vm129, %v1795, 0.0
    %v1799 = vsel %vm129, %v1797, 0.0
    %v1800 = vadd.f32 %v1798, %v1799
    %v1801 = vrot.slane %v1800, 4
    %v1802 = vadd.f32 %v1800, %v1801
    %v1803 = vrot.slane %v1802, 2
    %v1804 = vadd.f32 %v1802, %v1803
    %v1805 = vrot.slane %v1804, 1
    %v1806 = vadd.f32 %v1804, %v1805
    %v1807 = vrcp.pop %v1806
    %v1808 = vmul.f32 %v1806, %v1807
    %v1809 = vsub.f32 1.0, %v1808
    %v1810 = vmul.f32 %v1807, %v1809
    %v1811 = vadd.f32 %v1807, %v1810
    %vm1812 = vweird.f32 %v1806
    %vm1813 = vweird.f32 %v1807
    %vm1814 = vmor %vm1812, %vm1813
    %v1815 = vsel %vm1814, %v1807, %v1811
    %v1816 = vand.u32 2147483647, %v1806
    %vm1817 = vcmp.eq.f32.partialorder %v1816, 8.507059e+37
    %v1818 = vand.u32 %v1806, 2147483648
    %v1819 = vor.u32 1.1754944e-38, %v1818
    %v1820 = vsel %vm1817, %v1819, %v1815
    %v1821 = vmul.f32 %v1795, %v1820
    %v1822 = vmul.f32 %v1797, %v1820
    %v1823 = vpack.c.bf16 %v1822, %v1821
    %1824 = vxpose.xlu0.c.b16.start [1/8] %v1823, 128
    %1825 = vxpose.xlu0.c.b16.cont [2/8] 0, 128
    %1826 = vxpose.xlu0.c.b16.cont [3/8] 0, 128
    %1827 = vxpose.xlu0.c.b16.cont [4/8] 0, 128
    %1828 = vxpose.xlu0.c.b16.cont [5/8] 0, 128
    %1829 = vxpose.xlu0.c.b16.cont [6/8] 0, 128
    %1830 = vxpose.xlu0.c.b16.cont [7/8] 0, 128
    %1831 = vxpose.xlu0.c.b16.end [8/8] 0, 128
    %v1832 = vpop.trf.xlu0
    %v1833 = vpop.trf.xlu0
    %v1834 = vpop.trf.xlu0
    %v1835 = vpop.trf.xlu0
    %v1836 = vpop.trf.xlu0
    %v1837 = vpop.trf.xlu0
    %v1838 = vpop.trf.xlu0
    %v1839 = vpop.trf.xlu0
    %v1842 = vsel %vm129, %v1832, 0
    %1844 = vmatpush.bf16.msra.mxu0 0
    %1845 = vmatpush.bf16.msra.mxu0 0
    %1846 = vmatpush.bf16.msra.mxu0 0
    %1847 = vmatpush.bf16.msra.mxu0 0
    %1848 = vmatpush.bf16.msra.mxu0 0
    %1849 = vmatpush.bf16.msra.mxu0 0
    %1850 = vmatpush.bf16.msra.mxu0 0
    %1851 = vmatpush.bf16.msra.mxu0 %v1740
    %1852 = vmatmul.bf16.gmra.mxu0 %v1842
    %v1853 = vpop.f32.mrf.mxu0
    %v1854 = vadd.f32 0.0, %v1853
    %v1855 = vpop.f32.mrf.mxu0
    %v1856 = vadd.f32 0.0, %v1855
    %1857 = vdwg.mxu0
    %1860 = vrot.lane.b32.xlu0 %v1696, 8
    %v1861 = vpop.permute.xlu0 %1860
    %1862 = vrot.lane.b32.xlu0 %v1698, 8
    %v1863 = vpop.permute.xlu0 %1862
    %1868 = vrot.lane.b32.xlu0 %v1854, 16
    %v1869 = vpop.permute.xlu0 %1868
    %1870 = vrot.lane.b32.xlu0 %v1856, 16
    %v1871 = vpop.permute.xlu0 %1870
    %v1874 = vsel %vm225, %v1537, %v1861
    %v1875 = vsel %vm225, %v1539, %v1863
    %v1876 = vsel %vm129, %v1874, %v1869
    %v1877 = vsel %vm129, %v1875, %v1871
    %v1878 = vld [vmem:[#allocation7 + $0x19] sm:$0x1]
    %v1879 = vperm.slane %v1878, 0
    %v1880 = vadd.f32 %v1876, %v1879
    %v1881 = vadd.f32 %v1877, %v1879
    %v1882 = vld [vmem:[#allocation6 + $0x58] sm:$0xf]
    %v1883 = vld [vmem:[#allocation6 + $0x5c] sm:$0xf]
    %v1884 = vld [vmem:[#allocation6 + $0x60] sm:$0xf]
    %v1885 = vld [vmem:[#allocation7 + $0x1a] sm:$0x1]
    %v1886 = vpack.c.bf16 %v1881, %v1880
    %v1887 = vperm.slane %v1885, 0
    %v1891 = vunpack.c.l.b16 %v1882
    %v1892 = vunpack.c.l.b16 %v1883
    %v1893 = vunpack.c.l.b16 %v1884
    %v1894 = vpack.c.b16 %v1892, %v1891
    %v1895 = vpack.c.b16 %v1893, %v1893
    %v1898 = vsel %vm759, %v1886, 0
    %v1901 = vsel %vm229, %v1895, 0
    %1903 = vmatpush.bf16.msra.mxu0 0
    %1904 = vmatpush.bf16.msra.mxu0 0
    %1905 = vmatpush.bf16.msra.mxu0 0
    %1906 = vmatpush.bf16.msra.mxu0 0
    %1907 = vmatpush.bf16.msra.mxu0 0
    %1908 = vmatpush.bf16.msra.mxu0 0
    %1909 = vmatpush.bf16.msra.mxu0 %v1901
    %1910 = vmatpush.bf16.msra.mxu0 %v1894
    %1911 = vmatmul.bf16.gmra.mxu0 %v1898
    %v1912 = vpop.f32.mrf.mxu0
    %v1913 = vadd.f32 %v1887, %v1912
    %v1914 = vpop.f32.mrf.mxu0
    %v1915 = vadd.f32 %v1887, %v1914
    %1916 = vdwg.mxu0
    %v1917 = vmax.f32 %v1913, 0.0
    %v1918 = vmax.f32 %v1915, 0.0
    %v1919 = vld [vmem:[#allocation6 + $0x68] sm:$0xf]
    %v1920 = vld [vmem:[#allocation6 + $0x6c] sm:$0xf]
    %v1921 = vld [vmem:[#allocation6 + $0x70] sm:$0xf]
    %v1922 = vld [vmem:[#allocation6 + $0x74] sm:$0xf]
    %v1923 = vld [vmem:[#allocation7 + $0x1b] sm:$0x1]
    %v1924 = vpack.c.bf16 %v1918, %v1917
    %v1925 = vperm.slane %v1923, 0
    %v1930 = vunpack.c.l.b16 %v1919
    %v1931 = vunpack.c.l.b16 %v1920
    %v1932 = vunpack.c.l.b16 %v1921
    %v1933 = vunpack.c.l.b16 %v1922
    %v1934 = vpack.c.b16 %v1931, %v1930
    %v1935 = vpack.c.b16 %v1933, %v1932
    %v1939 = vsel %vm210, %v1924, 0
    %1941 = vmatpush.bf16.msra.mxu0 0
    %1942 = vmatpush.bf16.msra.mxu0 0
    %1943 = vmatpush.bf16.msra.mxu0 0
    %1944 = vmatpush.bf16.msra.mxu0 0
    %1945 = vmatpush.bf16.msra.mxu0 0
    %1946 = vmatpush.bf16.msra.mxu0 0
    %1947 = vmatpush.bf16.msra.mxu0 %v1935
    %1948 = vmatpush.bf16.msra.mxu0 %v1934
    %1949 = vmatmul.bf16.gmra.mxu0 %v1939
    %v1950 = vpop.f32.mrf.mxu0
    %v1951 = vadd.f32 %v1925, %v1950
    %v1952 = vpop.f32.mrf.mxu0
    %v1953 = vadd.f32 %v1925, %v1952
    %1954 = vdwg.mxu0
    %1955 = vst.msk [vmem:[%s4] sm:$0xff] %vm225, %v1951
    %1956 = vst.msk [vmem:[%s4 + $0x8] sm:$0xff] %vm225, %v1953
    // Predicated region
    $region34: #{tpu_custom_call.1} parent=1 // pred_check
      _
    $region35: #{tpu_custom_call.1} parent=1 // pred_check_branch
      %1958 = sbr.rel (0) target = $region37
    $region36: #{tpu_custom_call.1} parent=1 // pred_region
      _
    $region37: #{tpu_custom_call.1} parent=1 // pred_fallthru
      _
    // Predicated region
    $region38: #{tpu_custom_call.1} parent=1 // pred_check
      _
    $region39: #{tpu_custom_call.1} parent=1 // pred_check_branch
      %1960 = sbr.rel (0) target = $region41
    $region40: #{tpu_custom_call.1} parent=1 // pred_region
      _
    $region41: #{tpu_custom_call.1} parent=1 // pred_fallthru
      _
    %1961 = vsyncpa [#allocation3], 1
    %1962 = vsyncpa [#allocation5], 1
    %1963 = vsyncpa [#allocation8], 1

</llo_original>
